<compile_context>
chip_gen: v5e
topology: v5e:2x2
jax: 0.10.0
libtpu: 0.0.40
codegen_flags: <defaults>
</compile_context>

<pallas_src>
import functools
import math

import jax
import jax.numpy as jnp
from jax.experimental import pallas as pl
from jax.experimental.pallas import tpu as pltpu

D_MODEL = 64
NUM_HEADS = 4
D_HEAD = D_MODEL // NUM_HEADS
NUM_BLOCKS = 8
FFN_HIDDEN = 4 * D_MODEL
LN_EPS = 1e-5


# ----------------------------- shared math ----------------------------------

def _layer_norm(x, gamma, beta):
    mean = jnp.mean(x, axis=-1, keepdims=True)
    var = jnp.mean((x - mean) ** 2, axis=-1, keepdims=True)
    return (x - mean) * jax.lax.rsqrt(var + LN_EPS) * gamma + beta


# ----------------------------- Pallas kernel --------------------------------

def _fused_lm_kernel(x_ref, bias_ref,
                     wq_ref, bq_ref, wk_ref, bk_ref, wv_ref, bv_ref,
                     wo_ref, bo_ref, g1_ref, bn1_ref,
                     w1_ref, b1_ref, w2_ref, b2_ref, g2_ref, bn2_ref,
                     wf_ref, bf_ref,
                     logits_ref, act_ref,
                     *, batch, seq):
    """Runs one transformer block per grid step; grid axis = layer index.

    The running activation stays in `act_ref` (VMEM scratch) across all layers;
    the final linear is applied on the last layer step only.
    """
    layer = pl.program_id(0)
    n = batch * seq

    @pl.when(layer == 0)
    def _():
        act_ref[...] = x_ref[...]          # load embeddings+pos-enc once

    x = act_ref[...]                       # (N, D) with N = B*T

    # --- multi-head attention -------------------------------------------------
    # Q/K/V projections for all heads at once, as dense 2-D matmuls.
    q = jnp.dot(x, wq_ref[...], preferred_element_type=jnp.float32) + bq_ref[...]
    k = jnp.dot(x, wk_ref[...], preferred_element_type=jnp.float32) + bk_ref[...]
    v = jnp.dot(x, wv_ref[...], preferred_element_type=jnp.float32) + bv_ref[...]

    # (N, D) -> (B, T, D): splits the sublane dim along the 8-row tile boundary
    # (layout-preserving), so batches never attend across each other.
    q3 = q.reshape(batch, seq, D_MODEL)
    k3 = k.reshape(batch, seq, D_MODEL)
    v3 = v.reshape(batch, seq, D_MODEL)

    bias = bias_ref[...][None, :, :]       # (1, T, T) additive causal mask (-inf above diag)
    scale = 1.0 / math.sqrt(D_HEAD)
    wo = wo_ref[...]                       # (D, D)

    # Per-head attention (static unroll, NUM_HEADS = 4).  The head concat is
    # folded into the output projection: concat_h(A_h) @ Wo == sum_h A_h @ Wo_h.
    attn = jnp.zeros((n, D_MODEL), jnp.float32)
    for h in range(NUM_HEADS):
        sl = slice(h * D_HEAD, (h + 1) * D_HEAD)
        qh, kh, vh = q3[:, :, sl], k3[:, :, sl], v3[:, :, sl]
        s = jnp.einsum('bqd,bkd->bqk', qh, kh,
                       preferred_element_type=jnp.float32)
        s = s * scale + bias
        # TODO(synk): original calls F.softmax without `dim`; we use the
        # intended softmax over the key axis (dim=-1).
        s = s - jnp.max(s, axis=-1, keepdims=True)
        p = jnp.exp(s)
        p = p / jnp.sum(p, axis=-1, keepdims=True)
        ah = jnp.einsum('bqk,bkd->bqd', p, vh,
                        preferred_element_type=jnp.float32)   # (B, T, Dh)
        attn = attn + jnp.dot(ah.reshape(n, D_HEAD), wo[sl, :],
                              preferred_element_type=jnp.float32)
    attn = attn + bo_ref[...]

    y = _layer_norm(attn + x, g1_ref[...], bn1_ref[...])

    # --- feed-forward ----------------------------------------------------------
    hidden = jnp.dot(y, w1_ref[...], preferred_element_type=jnp.float32) + b1_ref[...]
    hidden = jnp.maximum(hidden, 0.0)
    ffn = jnp.dot(hidden, w2_ref[...], preferred_element_type=jnp.float32) + b2_ref[...]
    # TODO(synk): nn.Dropout(0.1) omitted (identity in eval mode).

    new_act = _layer_norm(ffn + y, g2_ref[...], bn2_ref[...])
    act_ref[...] = new_act

    # --- final vocab projection (last layer only) ------------------------------
    @pl.when(layer == pl.num_programs(0) - 1)
    def _():
        logits_ref[...] = (jnp.dot(new_act, wf_ref[...],
                                   preferred_element_type=jnp.float32)
                           + bf_ref[...])


# ------------------------------ JAX wrappers ---------------------------------

def fused_transformer(x2, bias, stacked_params, w_final, b_final, batch, seq):
    """One pallas_call over all NUM_BLOCKS layers + final linear."""
    n, d = x2.shape
    vocab = w_final.shape[1]

    def resident(arr):
        # Same block index every grid step -> fetched once, stays VMEM-resident.
        return pl.BlockSpec(tuple(arr.shape), lambda l: (0,) * arr.ndim)

    def per_layer(arr):
        # Leading layer axis streamed (and double-buffer prefetched) per step.
        return pl.BlockSpec((None,) + tuple(arr.shape[1:]),
                            lambda l: (l,) + (0,) * (arr.ndim - 1))

    in_specs = ([resident(x2), resident(bias)]
                + [per_layer(a) for a in stacked_params]
                + [resident(w_final), resident(b_final)])

    kernel = functools.partial(_fused_lm_kernel, batch=batch, seq=seq)

    # TODO(synk): for long sequences / big batches, add query/batch tiling (flash
    # style) and a leading "parallel" grid axis so v7x's second TensorCore is used.
    return pl.pallas_call(
        kernel,
        out_shape=jax.ShapeDtypeStruct((n, vocab), jnp.float32),
        grid_spec=pltpu.PrefetchScalarGridSpec(
            num_scalar_prefetch=0,
            grid=(NUM_BLOCKS,),
            in_specs=in_specs,
            out_specs=pl.BlockSpec((n, vocab), lambda l: (0, 0)),
            scratch_shapes=[pltpu.VMEM((n, d), jnp.float32)],
        ),
        compiler_params=pltpu.CompilerParams(
            dimension_semantics=("arbitrary",)),       # layers are sequential
    )(x2, bias, *stacked_params, w_final, b_final)


def positional_encoding(T):
    # Matches the PyTorch double loop: denominator = 10000 ** (2*i / d_model)
    # where i is the *even* dimension index (0, 2, 4, ...).
    pos = jnp.arange(T, dtype=jnp.float32)[:, None]
    i_even = jnp.arange(0, D_MODEL, 2, dtype=jnp.float32)[None, :]
    denom = jnp.power(10000.0, 2.0 * i_even / D_MODEL)
    angles = pos / denom                                # (T, D_MODEL // 2)
    pe = jnp.zeros((T, D_MODEL), jnp.float32)
    pe = pe.at[:, 0::2].set(jnp.sin(angles))
    pe = pe.at[:, 1::2].set(jnp.cos(angles))
    return pe


def causal_bias(T):
    row = jnp.arange(T, dtype=jnp.int32)[:, None]
    col = jnp.arange(T, dtype=jnp.int32)[None, :]
    return jnp.where(col > row, -jnp.inf, 0.0).astype(jnp.float32)


def forward(idx, emb_table, stacked_params, w_final, b_final):
    """TransformerLanguageModel.forward (targets=None -> loss is None)."""
    B, T = idx.shape
    x = jnp.take(emb_table, idx, axis=0)                # (B, T, D) embedding lookup
    x = x + positional_encoding(T)[None, :, :]
    logits2 = fused_transformer(x.reshape(B * T, D_MODEL), causal_bias(T),
                                stacked_params, w_final, b_final, B, T)
    return logits2.reshape(B, T, -1), None


# ---------------------------- parameter init ---------------------------------

def uniform_linear(key, fan_in, fan_out):
    """PyTorch nn.Linear default init: U(-1/sqrt(fan_in), 1/sqrt(fan_in))."""
    kw, kb = jax.random.split(key)
    bound = 1.0 / math.sqrt(fan_in)
    w = jax.random.uniform(kw, (fan_in, fan_out), jnp.float32, -bound, bound)
    b = jax.random.uniform(kb, (1, fan_out), jnp.float32, -bound, bound)
    return w, b


def init_block(key):
    keys = jax.random.split(key, 15)
    wq_p, bq_p, wk_p, bk_p, wv_p, bv_p = [], [], [], [], [], []
    for h in range(NUM_HEADS):
        wq, bq = uniform_linear(keys[h], D_MODEL, D_HEAD)
        wk, bk = uniform_linear(keys[NUM_HEADS + h], D_MODEL, D_HEAD)
        wv, bv = uniform_linear(keys[2 * NUM_HEADS + h], D_MODEL, D_HEAD)
        wq_p.append(wq); bq_p.append(bq)
        wk_p.append(wk); bk_p.append(bk)
        wv_p.append(wv); bv_p.append(bv)
    wq = jnp.concatenate(wq_p, axis=1); bq = jnp.concatenate(bq_p, axis=1)
    wk = jnp.concatenate(wk_p, axis=1); bk = jnp.concatenate(bk_p, axis=1)
    wv = jnp.concatenate(wv_p, axis=1); bv = jnp.concatenate(bv_p, axis=1)
    wo, bo = uniform_linear(keys[12], D_MODEL, D_MODEL)
    w1, b1 = uniform_linear(keys[13], D_MODEL, FFN_HIDDEN)
    w2, b2 = uniform_linear(keys[14], FFN_HIDDEN, D_MODEL)
    g1 = jnp.ones((1, D_MODEL), jnp.float32)
    bn1 = jnp.zeros((1, D_MODEL), jnp.float32)
    g2 = jnp.ones((1, D_MODEL), jnp.float32)
    bn2 = jnp.zeros((1, D_MODEL), jnp.float32)
    return (wq, bq, wk, bk, wv, bv, wo, bo,
            g1, bn1, w1, b1, w2, b2, g2, bn2)


def stack_block_params(block_params):
    """Stack per-layer parameter tuples along a new leading layer axis."""
    n = len(block_params[0])
    return tuple(jnp.stack([bp[i] for bp in block_params], axis=0)
                 for i in range(n))


# ------------------------- pure-JAX reference check --------------------------

def reference_forward(idx, emb_table, block_params, w_final, b_final):
    P = jax.lax.Precision.HIGHEST
    B, T = idx.shape
    x = jnp.take(emb_table, idx, axis=0) + positional_encoding(T)[None, :, :]
    row = jnp.arange(T)[:, None]
    col = jnp.arange(T)[None, :]
    mask = (col > row)[None, :, :]
    for (wq, bq, wk, bk, wv, bv, wo, bo, g1, bn1,
         w1, b1, w2, b2, g2, bn2) in block_params:
        q = jnp.einsum('btd,de->bte', x, wq, precision=P) + bq
        k = jnp.einsum('btd,de->bte', x, wk, precision=P) + bk
        v = jnp.einsum('btd,de->bte', x, wv, precision=P) + bv
        heads = []
        for h in range(NUM_HEADS):
            sl = slice(h * D_HEAD, (h + 1) * D_HEAD)
            s = jnp.einsum('bqd,bkd->bqk', q[..., sl], k[..., sl], precision=P)
            s = s / math.sqrt(D_HEAD)
            s = jnp.where(mask, -jnp.inf, s)
            p = jax.nn.softmax(s, axis=-1)
            heads.append(jnp.einsum('bqk,bkd->bqd', p, v[..., sl], precision=P))
        a = jnp.concatenate(heads, axis=-1)
        attn = jnp.einsum('btd,de->bte', a, wo, precision=P) + bo
        y = _layer_norm(attn + x, g1, bn1)
        hidden = jax.nn.relu(jnp.einsum('btd,df->btf', y, w1, precision=P) + b1)
        ffn = jnp.einsum('btf,fd->btd', hidden, w2, precision=P) + b2
        x = _layer_norm(ffn + y, g2, bn2)
    return jnp.einsum('btd,dv->btv', x, w_final, precision=P) + b_final


# --------------------------------- main ---------------------------------------

if __name__ == "__main__":
    key = jax.random.PRNGKey(0)

    # Synthetic deterministic "tokenized_text"; max_token_id + 1 = vocab size.
    tokenized_text = jnp.arange(128, dtype=jnp.int32)
    vocab = int(tokenized_text.max()) + 1               # 128

    B, T = 2, 8

    key, k_emb, k_final, k_idx, k_blocks = jax.random.split(key, 5)
    emb_table = jax.random.normal(k_emb, (vocab, D_MODEL), jnp.float32)  # nn.Embedding N(0,1)
    w_final, b_final = uniform_linear(k_final, D_MODEL, vocab)
    block_keys = jax.random.split(k_blocks, NUM_BLOCKS)
    block_params = tuple(init_block(bk) for bk in block_keys)
    stacked_params = stack_block_params(block_params)

    idx = jax.random.randint(k_idx, (B, T), 0, vocab, dtype=jnp.int32)

    fwd = jax.jit(forward)
    logits, loss = fwd(idx, emb_table, stacked_params, w_final, b_final)
    jax.block_until_ready(logits)

    assert logits.shape == (B, T, vocab), logits.shape
    assert loss is None
    assert bool(jnp.all(jnp.isfinite(logits)))

    ref = reference_forward(idx, emb_table, block_params, w_final, b_final)
    max_err = float(jnp.max(jnp.abs(logits - ref)))
    assert max_err < 1e-2, max_err

    print("KERNEL_OK")
</pallas_src>

<mosaic_0001>
module attributes {stable_mosaic.version = 11 : i64} {
  func.func @_fused_lm_kernel(%arg0: i32, %arg1: memref<16x64xf32, #tpu.memory_space<vmem>>, %arg2: memref<8x8xf32, #tpu.memory_space<vmem>>, %arg3: memref<1x64x64xf32, #tpu.memory_space<vmem>>, %arg4: memref<1x1x64xf32, #tpu.memory_space<vmem>>, %arg5: memref<1x64x64xf32, #tpu.memory_space<vmem>>, %arg6: memref<1x1x64xf32, #tpu.memory_space<vmem>>, %arg7: memref<1x64x64xf32, #tpu.memory_space<vmem>>, %arg8: memref<1x1x64xf32, #tpu.memory_space<vmem>>, %arg9: memref<1x64x64xf32, #tpu.memory_space<vmem>>, %arg10: memref<1x1x64xf32, #tpu.memory_space<vmem>>, %arg11: memref<1x1x64xf32, #tpu.memory_space<vmem>>, %arg12: memref<1x1x64xf32, #tpu.memory_space<vmem>>, %arg13: memref<1x64x256xf32, #tpu.memory_space<vmem>>, %arg14: memref<1x1x256xf32, #tpu.memory_space<vmem>>, %arg15: memref<1x256x64xf32, #tpu.memory_space<vmem>>, %arg16: memref<1x1x64xf32, #tpu.memory_space<vmem>>, %arg17: memref<1x1x64xf32, #tpu.memory_space<vmem>>, %arg18: memref<1x1x64xf32, #tpu.memory_space<vmem>>, %arg19: memref<64x128xf32, #tpu.memory_space<vmem>>, %arg20: memref<1x128xf32, #tpu.memory_space<vmem>>, %arg21: memref<16x128xf32, #tpu.memory_space<vmem>>, %arg22: memref<16x64xf32, #tpu.memory_space<vmem>>) attributes {dimension_semantics = [#tpu.dimension_semantics<arbitrary>], iteration_bounds = array<i64: 8>, scalar_prefetch = 0 : i64, scratch_operands = 1 : i64, tpu.core_type = #tpu.core_type<tc>, window_params = [{pipeline_mode = #tpu.pipeline_mode<synchronous>, transform_indices = @transform_0, window_bounds = array<i64: 16, 64>}, {pipeline_mode = #tpu.pipeline_mode<synchronous>, transform_indices = @transform_1, window_bounds = array<i64: 8, 8>}, {transform_indices = @transform_2, window_bounds = array<i64: 1, 64, 64>}, {transform_indices = @transform_3, window_bounds = array<i64: 1, 1, 64>}, {transform_indices = @transform_4, window_bounds = array<i64: 1, 64, 64>}, {transform_indices = @transform_5, window_bounds = array<i64: 1, 1, 64>}, {transform_indices = @transform_6, window_bounds = array<i64: 1, 64, 64>}, {transform_indices = @transform_7, window_bounds = array<i64: 1, 1, 64>}, {transform_indices = @transform_8, window_bounds = array<i64: 1, 64, 64>}, {transform_indices = @transform_9, window_bounds = array<i64: 1, 1, 64>}, {transform_indices = @transform_10, window_bounds = array<i64: 1, 1, 64>}, {transform_indices = @transform_11, window_bounds = array<i64: 1, 1, 64>}, {transform_indices = @transform_12, window_bounds = array<i64: 1, 64, 256>}, {transform_indices = @transform_13, window_bounds = array<i64: 1, 1, 256>}, {transform_indices = @transform_14, window_bounds = array<i64: 1, 256, 64>}, {transform_indices = @transform_15, window_bounds = array<i64: 1, 1, 64>}, {transform_indices = @transform_16, window_bounds = array<i64: 1, 1, 64>}, {transform_indices = @transform_17, window_bounds = array<i64: 1, 1, 64>}, {pipeline_mode = #tpu.pipeline_mode<synchronous>, transform_indices = @transform_18, window_bounds = array<i64: 64, 128>}, {pipeline_mode = #tpu.pipeline_mode<synchronous>, transform_indices = @transform_19, window_bounds = array<i64: 1, 128>}, {pipeline_mode = #tpu.pipeline_mode<synchronous>, transform_indices = @transform_20, window_bounds = array<i64: 16, 128>}]} {
    %c0_i32 = arith.constant 0 : i32
    %0 = arith.cmpi eq, %arg0, %c0_i32 : i32
    %1 = arith.extui %0 : i1 to i32
    %c0_i32_0 = arith.constant 0 : i32
    %2 = arith.cmpi ne, %1, %c0_i32_0 : i32
    scf.if %2 {
      %c0_95 = arith.constant 0 : index
      %c0_96 = arith.constant 0 : index
      %199 = vector.load %arg1[%c0_95, %c0_96] : memref<16x64xf32, #tpu.memory_space<vmem>>, vector<16x64xf32>
      %c0_97 = arith.constant 0 : index
      %c0_98 = arith.constant 0 : index
      %200 = vector.load %arg22[%c0_97, %c0_98] : memref<16x64xf32, #tpu.memory_space<vmem>>, vector<16x64xf32>
      tpu.vector_store %arg22[%c0_97, %c0_98], %199 {strides = array<i32>} : memref<16x64xf32, #tpu.memory_space<vmem>>, vector<16x64xf32>,
    } else {
    }
    %c0 = arith.constant 0 : index
    %c0_1 = arith.constant 0 : index
    %3 = vector.load %arg22[%c0, %c0_1] : memref<16x64xf32, #tpu.memory_space<vmem>>, vector<16x64xf32>
    %c0_2 = arith.constant 0 : index
    %c0_3 = arith.constant 0 : index
    %c0_4 = arith.constant 0 : index
    %4 = vector.load %arg3[%c0_2, %c0_3, %c0_4] : memref<1x64x64xf32, #tpu.memory_space<vmem>>, vector<1x64x64xf32>
    %5 = vector.shape_cast %4 : vector<1x64x64xf32> to vector<64x64xf32>
    %cst = arith.constant dense<0.000000e+00> : vector<16x64xf32>
    %6 = tpu.matmul %3, %5, %cst {dimension_numbers = #tpu.dot_dimension_numbers<[1], [0], [0], [1], [0, 0, 1, 1], [], []>} : vector<16x64xf32>, vector<64x64xf32>, vector<16x64xf32> -> vector<16x64xf32>
    %c0_5 = arith.constant 0 : index
    %c0_6 = arith.constant 0 : index
    %c0_7 = arith.constant 0 : index
    %7 = vector.load %arg4[%c0_5, %c0_6, %c0_7] : memref<1x1x64xf32, #tpu.memory_space<vmem>>, vector<1x1x64xf32>
    %8 = vector.shape_cast %7 : vector<1x1x64xf32> to vector<1x64xf32>
    %9 = vector.broadcast %8 : vector<1x64xf32> to vector<16x64xf32>
    %10 = arith.addf %6, %9 : vector<16x64xf32>
    %c0_8 = arith.constant 0 : index
    %c0_9 = arith.constant 0 : index
    %c0_10 = arith.constant 0 : index
    %11 = vector.load %arg5[%c0_8, %c0_9, %c0_10] : memref<1x64x64xf32, #tpu.memory_space<vmem>>, vector<1x64x64xf32>
    %12 = vector.shape_cast %11 : vector<1x64x64xf32> to vector<64x64xf32>
    %cst_11 = arith.constant dense<0.000000e+00> : vector<16x64xf32>
    %13 = tpu.matmul %3, %12, %cst_11 {dimension_numbers = #tpu.dot_dimension_numbers<[1], [0], [0], [1], [0, 0, 1, 1], [], []>} : vector<16x64xf32>, vector<64x64xf32>, vector<16x64xf32> -> vector<16x64xf32>
    %c0_12 = arith.constant 0 : index
    %c0_13 = arith.constant 0 : index
    %c0_14 = arith.constant 0 : index
    %14 = vector.load %arg6[%c0_12, %c0_13, %c0_14] : memref<1x1x64xf32, #tpu.memory_space<vmem>>, vector<1x1x64xf32>
    %15 = vector.shape_cast %14 : vector<1x1x64xf32> to vector<1x64xf32>
    %16 = vector.broadcast %15 : vector<1x64xf32> to vector<16x64xf32>
    %17 = arith.addf %13, %16 : vector<16x64xf32>
    %c0_15 = arith.constant 0 : index
    %c0_16 = arith.constant 0 : index
    %c0_17 = arith.constant 0 : index
    %18 = vector.load %arg7[%c0_15, %c0_16, %c0_17] : memref<1x64x64xf32, #tpu.memory_space<vmem>>, vector<1x64x64xf32>
    %19 = vector.shape_cast %18 : vector<1x64x64xf32> to vector<64x64xf32>
    %cst_18 = arith.constant dense<0.000000e+00> : vector<16x64xf32>
    %20 = tpu.matmul %3, %19, %cst_18 {dimension_numbers = #tpu.dot_dimension_numbers<[1], [0], [0], [1], [0, 0, 1, 1], [], []>} : vector<16x64xf32>, vector<64x64xf32>, vector<16x64xf32> -> vector<16x64xf32>
    %c0_19 = arith.constant 0 : index
    %c0_20 = arith.constant 0 : index
    %c0_21 = arith.constant 0 : index
    %21 = vector.load %arg8[%c0_19, %c0_20, %c0_21] : memref<1x1x64xf32, #tpu.memory_space<vmem>>, vector<1x1x64xf32>
    %22 = vector.shape_cast %21 : vector<1x1x64xf32> to vector<1x64xf32>
    %23 = vector.broadcast %22 : vector<1x64xf32> to vector<16x64xf32>
    %24 = arith.addf %20, %23 : vector<16x64xf32>
    %25 = vector.shape_cast %10 : vector<16x64xf32> to vector<2x8x64xf32>
    %26 = vector.shape_cast %17 : vector<16x64xf32> to vector<2x8x64xf32>
    %27 = vector.shape_cast %24 : vector<16x64xf32> to vector<2x8x64xf32>
    %c0_22 = arith.constant 0 : index
    %c0_23 = arith.constant 0 : index
    %28 = vector.load %arg2[%c0_22, %c0_23] : memref<8x8xf32, #tpu.memory_space<vmem>>, vector<8x8xf32>
    %29 = vector.shape_cast %28 : vector<8x8xf32> to vector<1x8x8xf32>
    %c0_24 = arith.constant 0 : index
    %c0_25 = arith.constant 0 : index
    %c0_26 = arith.constant 0 : index
    %30 = vector.load %arg9[%c0_24, %c0_25, %c0_26] : memref<1x64x64xf32, #tpu.memory_space<vmem>>, vector<1x64x64xf32>
    %31 = vector.shape_cast %30 : vector<1x64x64xf32> to vector<64x64xf32>
    %cst_27 = arith.constant 0.000000e+00 : f32
    %32 = vector.broadcast %cst_27 : f32 to vector<16x64xf32>
    %33 = vector.extract_strided_slice %25 {offsets = [0, 0, 0], sizes = [2, 8, 16], strides = [1, 1, 1]} : vector<2x8x64xf32> to vector<2x8x16xf32>
    %34 = vector.extract_strided_slice %26 {offsets = [0, 0, 0], sizes = [2, 8, 16], strides = [1, 1, 1]} : vector<2x8x64xf32> to vector<2x8x16xf32>
    %35 = vector.extract_strided_slice %27 {offsets = [0, 0, 0], sizes = [2, 8, 16], strides = [1, 1, 1]} : vector<2x8x64xf32> to vector<2x8x16xf32>
    "tpu.trace_start"() <{level = 10 : i32, message = "bqd,bkd->bqk"}> : () -> ()
    %cst_28 = arith.constant dense<0.000000e+00> : vector<2x8x8xf32>
    %36 = tpu.matmul %33, %34, %cst_28 {dimension_numbers = #tpu.dot_dimension_numbers<[2], [2], [1], [1], [0, 0, 0, 1, 1, 1], [0], [0]>} : vector<2x8x16xf32>, vector<2x8x16xf32>, vector<2x8x8xf32> -> vector<2x8x8xf32>
    "tpu.trace_stop"() : () -> ()
    %cst_29 = arith.constant 2.500000e-01 : f32
    %37 = vector.broadcast %cst_29 : f32 to vector<2x8x8xf32>
    %38 = arith.mulf %36, %37 : vector<2x8x8xf32>
    %39 = vector.broadcast %29 : vector<1x8x8xf32> to vector<2x8x8xf32>
    %40 = arith.addf %38, %39 : vector<2x8x8xf32>
    %cst_30 = arith.constant dense<0xFF800000> : vector<2x8xf32>
    %41 = vector.multi_reduction <maximumf>, %40, %cst_30 [2] : vector<2x8x8xf32> to vector<2x8xf32>
    %42 = vector.shape_cast %41 : vector<2x8xf32> to vector<2x8x1xf32>
    %43 = vector.broadcast %42 : vector<2x8x1xf32> to vector<2x8x8xf32>
    %44 = arith.subf %40, %43 : vector<2x8x8xf32>
    %45 = math.exp %44 : vector<2x8x8xf32>
    %cst_31 = arith.constant dense<0.000000e+00> : vector<2x8xf32>
    %46 = vector.multi_reduction <add>, %45, %cst_31 [2] : vector<2x8x8xf32> to vector<2x8xf32>
    %47 = vector.shape_cast %46 : vector<2x8xf32> to vector<2x8x1xf32>
    %48 = vector.broadcast %47 : vector<2x8x1xf32> to vector<2x8x8xf32>
    %49 = arith.divf %45, %48 : vector<2x8x8xf32>
    "tpu.trace_start"() <{level = 10 : i32, message = "bqk,bkd->bqd"}> : () -> ()
    %cst_32 = arith.constant dense<0.000000e+00> : vector<2x8x16xf32>
    %50 = tpu.matmul %49, %35, %cst_32 {dimension_numbers = #tpu.dot_dimension_numbers<[2], [1], [1], [2], [0, 0, 0, 1, 1, 2], [0], [0]>} : vector<2x8x8xf32>, vector<2x8x16xf32>, vector<2x8x16xf32> -> vector<2x8x16xf32>
    "tpu.trace_stop"() : () -> ()
    %51 = vector.shape_cast %50 : vector<2x8x16xf32> to vector<16x16xf32>
    %52 = vector.extract_strided_slice %31 {offsets = [0, 0], sizes = [16, 64], strides = [1, 1]} : vector<64x64xf32> to vector<16x64xf32>
    %cst_33 = arith.constant dense<0.000000e+00> : vector<16x64xf32>
    %53 = tpu.matmul %51, %52, %cst_33 {dimension_numbers = #tpu.dot_dimension_numbers<[1], [0], [0], [1], [0, 0, 1, 1], [], []>} : vector<16x16xf32>, vector<16x64xf32>, vector<16x64xf32> -> vector<16x64xf32>
    %54 = arith.addf %32, %53 : vector<16x64xf32>
    %55 = vector.extract_strided_slice %25 {offsets = [0, 0, 16], sizes = [2, 8, 16], strides = [1, 1, 1]} : vector<2x8x64xf32> to vector<2x8x16xf32>
    %56 = vector.extract_strided_slice %26 {offsets = [0, 0, 16], sizes = [2, 8, 16], strides = [1, 1, 1]} : vector<2x8x64xf32> to vector<2x8x16xf32>
    %57 = vector.extract_strided_slice %27 {offsets = [0, 0, 16], sizes = [2, 8, 16], strides = [1, 1, 1]} : vector<2x8x64xf32> to vector<2x8x16xf32>
    "tpu.trace_start"() <{level = 10 : i32, message = "bqd,bkd->bqk"}> : () -> ()
    %cst_34 = arith.constant dense<0.000000e+00> : vector<2x8x8xf32>
    %58 = tpu.matmul %55, %56, %cst_34 {dimension_numbers = #tpu.dot_dimension_numbers<[2], [2], [1], [1], [0, 0, 0, 1, 1, 1], [0], [0]>} : vector<2x8x16xf32>, vector<2x8x16xf32>, vector<2x8x8xf32> -> vector<2x8x8xf32>
    "tpu.trace_stop"() : () -> ()
    %cst_35 = arith.constant 2.500000e-01 : f32
    %59 = vector.broadcast %cst_35 : f32 to vector<2x8x8xf32>
    %60 = arith.mulf %58, %59 : vector<2x8x8xf32>
    %61 = vector.broadcast %29 : vector<1x8x8xf32> to vector<2x8x8xf32>
    %62 = arith.addf %60, %61 : vector<2x8x8xf32>
    %cst_36 = arith.constant dense<0xFF800000> : vector<2x8xf32>
    %63 = vector.multi_reduction <maximumf>, %62, %cst_36 [2] : vector<2x8x8xf32> to vector<2x8xf32>
    %64 = vector.shape_cast %63 : vector<2x8xf32> to vector<2x8x1xf32>
    %65 = vector.broadcast %64 : vector<2x8x1xf32> to vector<2x8x8xf32>
    %66 = arith.subf %62, %65 : vector<2x8x8xf32>
    %67 = math.exp %66 : vector<2x8x8xf32>
    %cst_37 = arith.constant dense<0.000000e+00> : vector<2x8xf32>
    %68 = vector.multi_reduction <add>, %67, %cst_37 [2] : vector<2x8x8xf32> to vector<2x8xf32>
    %69 = vector.shape_cast %68 : vector<2x8xf32> to vector<2x8x1xf32>
    %70 = vector.broadcast %69 : vector<2x8x1xf32> to vector<2x8x8xf32>
    %71 = arith.divf %67, %70 : vector<2x8x8xf32>
    "tpu.trace_start"() <{level = 10 : i32, message = "bqk,bkd->bqd"}> : () -> ()
    %cst_38 = arith.constant dense<0.000000e+00> : vector<2x8x16xf32>
    %72 = tpu.matmul %71, %57, %cst_38 {dimension_numbers = #tpu.dot_dimension_numbers<[2], [1], [1], [2], [0, 0, 0, 1, 1, 2], [0], [0]>} : vector<2x8x8xf32>, vector<2x8x16xf32>, vector<2x8x16xf32> -> vector<2x8x16xf32>
    "tpu.trace_stop"() : () -> ()
    %73 = vector.shape_cast %72 : vector<2x8x16xf32> to vector<16x16xf32>
    %74 = vector.extract_strided_slice %31 {offsets = [16, 0], sizes = [16, 64], strides = [1, 1]} : vector<64x64xf32> to vector<16x64xf32>
    %cst_39 = arith.constant dense<0.000000e+00> : vector<16x64xf32>
    %75 = tpu.matmul %73, %74, %cst_39 {dimension_numbers = #tpu.dot_dimension_numbers<[1], [0], [0], [1], [0, 0, 1, 1], [], []>} : vector<16x16xf32>, vector<16x64xf32>, vector<16x64xf32> -> vector<16x64xf32>
    %76 = arith.addf %54, %75 : vector<16x64xf32>
    %77 = vector.extract_strided_slice %25 {offsets = [0, 0, 32], sizes = [2, 8, 16], strides = [1, 1, 1]} : vector<2x8x64xf32> to vector<2x8x16xf32>
    %78 = vector.extract_strided_slice %26 {offsets = [0, 0, 32], sizes = [2, 8, 16], strides = [1, 1, 1]} : vector<2x8x64xf32> to vector<2x8x16xf32>
    %79 = vector.extract_strided_slice %27 {offsets = [0, 0, 32], sizes = [2, 8, 16], strides = [1, 1, 1]} : vector<2x8x64xf32> to vector<2x8x16xf32>
    "tpu.trace_start"() <{level = 10 : i32, message = "bqd,bkd->bqk"}> : () -> ()
    %cst_40 = arith.constant dense<0.000000e+00> : vector<2x8x8xf32>
    %80 = tpu.matmul %77, %78, %cst_40 {dimension_numbers = #tpu.dot_dimension_numbers<[2], [2], [1], [1], [0, 0, 0, 1, 1, 1], [0], [0]>} : vector<2x8x16xf32>, vector<2x8x16xf32>, vector<2x8x8xf32> -> vector<2x8x8xf32>
    "tpu.trace_stop"() : () -> ()
    %cst_41 = arith.constant 2.500000e-01 : f32
    %81 = vector.broadcast %cst_41 : f32 to vector<2x8x8xf32>
    %82 = arith.mulf %80, %81 : vector<2x8x8xf32>
    %83 = vector.broadcast %29 : vector<1x8x8xf32> to vector<2x8x8xf32>
    %84 = arith.addf %82, %83 : vector<2x8x8xf32>
    %cst_42 = arith.constant dense<0xFF800000> : vector<2x8xf32>
    %85 = vector.multi_reduction <maximumf>, %84, %cst_42 [2] : vector<2x8x8xf32> to vector<2x8xf32>
    %86 = vector.shape_cast %85 : vector<2x8xf32> to vector<2x8x1xf32>
    %87 = vector.broadcast %86 : vector<2x8x1xf32> to vector<2x8x8xf32>
    %88 = arith.subf %84, %87 : vector<2x8x8xf32>
    %89 = math.exp %88 : vector<2x8x8xf32>
    %cst_43 = arith.constant dense<0.000000e+00> : vector<2x8xf32>
    %90 = vector.multi_reduction <add>, %89, %cst_43 [2] : vector<2x8x8xf32> to vector<2x8xf32>
    %91 = vector.shape_cast %90 : vector<2x8xf32> to vector<2x8x1xf32>
    %92 = vector.broadcast %91 : vector<2x8x1xf32> to vector<2x8x8xf32>
    %93 = arith.divf %89, %92 : vector<2x8x8xf32>
    "tpu.trace_start"() <{level = 10 : i32, message = "bqk,bkd->bqd"}> : () -> ()
    %cst_44 = arith.constant dense<0.000000e+00> : vector<2x8x16xf32>
    %94 = tpu.matmul %93, %79, %cst_44 {dimension_numbers = #tpu.dot_dimension_numbers<[2], [1], [1], [2], [0, 0, 0, 1, 1, 2], [0], [0]>} : vector<2x8x8xf32>, vector<2x8x16xf32>, vector<2x8x16xf32> -> vector<2x8x16xf32>
    "tpu.trace_stop"() : () -> ()
    %95 = vector.shape_cast %94 : vector<2x8x16xf32> to vector<16x16xf32>
    %96 = vector.extract_strided_slice %31 {offsets = [32, 0], sizes = [16, 64], strides = [1, 1]} : vector<64x64xf32> to vector<16x64xf32>
    %cst_45 = arith.constant dense<0.000000e+00> : vector<16x64xf32>
    %97 = tpu.matmul %95, %96, %cst_45 {dimension_numbers = #tpu.dot_dimension_numbers<[1], [0], [0], [1], [0, 0, 1, 1], [], []>} : vector<16x16xf32>, vector<16x64xf32>, vector<16x64xf32> -> vector<16x64xf32>
    %98 = arith.addf %76, %97 : vector<16x64xf32>
    %99 = vector.extract_strided_slice %25 {offsets = [0, 0, 48], sizes = [2, 8, 16], strides = [1, 1, 1]} : vector<2x8x64xf32> to vector<2x8x16xf32>
    %100 = vector.extract_strided_slice %26 {offsets = [0, 0, 48], sizes = [2, 8, 16], strides = [1, 1, 1]} : vector<2x8x64xf32> to vector<2x8x16xf32>
    %101 = vector.extract_strided_slice %27 {offsets = [0, 0, 48], sizes = [2, 8, 16], strides = [1, 1, 1]} : vector<2x8x64xf32> to vector<2x8x16xf32>
    "tpu.trace_start"() <{level = 10 : i32, message = "bqd,bkd->bqk"}> : () -> ()
    %cst_46 = arith.constant dense<0.000000e+00> : vector<2x8x8xf32>
    %102 = tpu.matmul %99, %100, %cst_46 {dimension_numbers = #tpu.dot_dimension_numbers<[2], [2], [1], [1], [0, 0, 0, 1, 1, 1], [0], [0]>} : vector<2x8x16xf32>, vector<2x8x16xf32>, vector<2x8x8xf32> -> vector<2x8x8xf32>
    "tpu.trace_stop"() : () -> ()
    %cst_47 = arith.constant 2.500000e-01 : f32
    %103 = vector.broadcast %cst_47 : f32 to vector<2x8x8xf32>
    %104 = arith.mulf %102, %103 : vector<2x8x8xf32>
    %105 = vector.broadcast %29 : vector<1x8x8xf32> to vector<2x8x8xf32>
    %106 = arith.addf %104, %105 : vector<2x8x8xf32>
    %cst_48 = arith.constant dense<0xFF800000> : vector<2x8xf32>
    %107 = vector.multi_reduction <maximumf>, %106, %cst_48 [2] : vector<2x8x8xf32> to vector<2x8xf32>
    %108 = vector.shape_cast %107 : vector<2x8xf32> to vector<2x8x1xf32>
    %109 = vector.broadcast %108 : vector<2x8x1xf32> to vector<2x8x8xf32>
    %110 = arith.subf %106, %109 : vector<2x8x8xf32>
    %111 = math.exp %110 : vector<2x8x8xf32>
    %cst_49 = arith.constant dense<0.000000e+00> : vector<2x8xf32>
    %112 = vector.multi_reduction <add>, %111, %cst_49 [2] : vector<2x8x8xf32> to vector<2x8xf32>
    %113 = vector.shape_cast %112 : vector<2x8xf32> to vector<2x8x1xf32>
    %114 = vector.broadcast %113 : vector<2x8x1xf32> to vector<2x8x8xf32>
    %115 = arith.divf %111, %114 : vector<2x8x8xf32>
    "tpu.trace_start"() <{level = 10 : i32, message = "bqk,bkd->bqd"}> : () -> ()
    %cst_50 = arith.constant dense<0.000000e+00> : vector<2x8x16xf32>
    %116 = tpu.matmul %115, %101, %cst_50 {dimension_numbers = #tpu.dot_dimension_numbers<[2], [1], [1], [2], [0, 0, 0, 1, 1, 2], [0], [0]>} : vector<2x8x8xf32>, vector<2x8x16xf32>, vector<2x8x16xf32> -> vector<2x8x16xf32>
    "tpu.trace_stop"() : () -> ()
    %117 = vector.shape_cast %116 : vector<2x8x16xf32> to vector<16x16xf32>
    %118 = vector.extract_strided_slice %31 {offsets = [48, 0], sizes = [16, 64], strides = [1, 1]} : vector<64x64xf32> to vector<16x64xf32>
    %cst_51 = arith.constant dense<0.000000e+00> : vector<16x64xf32>
    %119 = tpu.matmul %117, %118, %cst_51 {dimension_numbers = #tpu.dot_dimension_numbers<[1], [0], [0], [1], [0, 0, 1, 1], [], []>} : vector<16x16xf32>, vector<16x64xf32>, vector<16x64xf32> -> vector<16x64xf32>
    %120 = arith.addf %98, %119 : vector<16x64xf32>
    %c0_52 = arith.constant 0 : index
    %c0_53 = arith.constant 0 : index
    %c0_54 = arith.constant 0 : index
    %121 = vector.load %arg10[%c0_52, %c0_53, %c0_54] : memref<1x1x64xf32, #tpu.memory_space<vmem>>, vector<1x1x64xf32>
    %122 = vector.shape_cast %121 : vector<1x1x64xf32> to vector<1x64xf32>
    %123 = vector.broadcast %122 : vector<1x64xf32> to vector<16x64xf32>
    %124 = arith.addf %120, %123 : vector<16x64xf32>
    %125 = arith.addf %124, %3 : vector<16x64xf32>
    %c0_55 = arith.constant 0 : index
    %c0_56 = arith.constant 0 : index
    %c0_57 = arith.constant 0 : index
    %126 = vector.load %arg11[%c0_55, %c0_56, %c0_57] : memref<1x1x64xf32, #tpu.memory_space<vmem>>, vector<1x1x64xf32>
    %127 = vector.shape_cast %126 : vector<1x1x64xf32> to vector<1x64xf32>
    %c0_58 = arith.constant 0 : index
    %c0_59 = arith.constant 0 : index
    %c0_60 = arith.constant 0 : index
    %128 = vector.load %arg12[%c0_58, %c0_59, %c0_60] : memref<1x1x64xf32, #tpu.memory_space<vmem>>, vector<1x1x64xf32>
    %129 = vector.shape_cast %128 : vector<1x1x64xf32> to vector<1x64xf32>
    %cst_61 = arith.constant dense<0.000000e+00> : vector<16xf32>
    %130 = vector.multi_reduction <add>, %125, %cst_61 [1] : vector<16x64xf32> to vector<16xf32>
    %131 = vector.shape_cast %130 : vector<16xf32> to vector<16x1xf32>
    %cst_62 = arith.constant 6.400000e+01 : f32
    %132 = vector.broadcast %cst_62 : f32 to vector<16x1xf32>
    %133 = arith.divf %131, %132 : vector<16x1xf32>
    %134 = vector.broadcast %133 : vector<16x1xf32> to vector<16x64xf32>
    %135 = arith.subf %125, %134 : vector<16x64xf32>
    %136 = arith.mulf %135, %135 : vector<16x64xf32>
    %cst_63 = arith.constant dense<0.000000e+00> : vector<16xf32>
    %137 = vector.multi_reduction <add>, %136, %cst_63 [1] : vector<16x64xf32> to vector<16xf32>
    %138 = vector.shape_cast %137 : vector<16xf32> to vector<16x1xf32>
    %cst_64 = arith.constant 6.400000e+01 : f32
    %139 = vector.broadcast %cst_64 : f32 to vector<16x1xf32>
    %140 = arith.divf %138, %139 : vector<16x1xf32>
    %141 = vector.broadcast %133 : vector<16x1xf32> to vector<16x64xf32>
    %142 = arith.subf %125, %141 : vector<16x64xf32>
    %cst_65 = arith.constant 9.99999974E-6 : f32
    %143 = vector.broadcast %cst_65 : f32 to vector<16x1xf32>
    %144 = arith.addf %140, %143 : vector<16x1xf32>
    %145 = math.rsqrt %144 : vector<16x1xf32>
    %146 = vector.broadcast %145 : vector<16x1xf32> to vector<16x64xf32>
    %147 = arith.mulf %142, %146 : vector<16x64xf32>
    %148 = vector.broadcast %127 : vector<1x64xf32> to vector<16x64xf32>
    %149 = arith.mulf %147, %148 : vector<16x64xf32>
    %150 = vector.broadcast %129 : vector<1x64xf32> to vector<16x64xf32>
    %151 = arith.addf %149, %150 : vector<16x64xf32>
    %c0_66 = arith.constant 0 : index
    %c0_67 = arith.constant 0 : index
    %c0_68 = arith.constant 0 : index
    %152 = vector.load %arg13[%c0_66, %c0_67, %c0_68] : memref<1x64x256xf32, #tpu.memory_space<vmem>>, vector<1x64x256xf32>
    %153 = vector.shape_cast %152 : vector<1x64x256xf32> to vector<64x256xf32>
    %cst_69 = arith.constant dense<0.000000e+00> : vector<16x256xf32>
    %154 = tpu.matmul %151, %153, %cst_69 {dimension_numbers = #tpu.dot_dimension_numbers<[1], [0], [0], [1], [0, 0, 1, 1], [], []>} : vector<16x64xf32>, vector<64x256xf32>, vector<16x256xf32> -> vector<16x256xf32>
    %c0_70 = arith.constant 0 : index
    %c0_71 = arith.constant 0 : index
    %c0_72 = arith.constant 0 : index
    %155 = vector.load %arg14[%c0_70, %c0_71, %c0_72] : memref<1x1x256xf32, #tpu.memory_space<vmem>>, vector<1x1x256xf32>
    %156 = vector.shape_cast %155 : vector<1x1x256xf32> to vector<1x256xf32>
    %157 = vector.broadcast %156 : vector<1x256xf32> to vector<16x256xf32>
    %158 = arith.addf %154, %157 : vector<16x256xf32>
    %cst_73 = arith.constant 0.000000e+00 : f32
    %159 = vector.broadcast %cst_73 : f32 to vector<16x256xf32>
    %160 = arith.maximumf %158, %159 : vector<16x256xf32>
    %c0_74 = arith.constant 0 : index
    %c0_75 = arith.constant 0 : index
    %c0_76 = arith.constant 0 : index
    %161 = vector.load %arg15[%c0_74, %c0_75, %c0_76] : memref<1x256x64xf32, #tpu.memory_space<vmem>>, vector<1x256x64xf32>
    %162 = vector.shape_cast %161 : vector<1x256x64xf32> to vector<256x64xf32>
    %cst_77 = arith.constant dense<0.000000e+00> : vector<16x64xf32>
    %163 = tpu.matmul %160, %162, %cst_77 {dimension_numbers = #tpu.dot_dimension_numbers<[1], [0], [0], [1], [0, 0, 1, 1], [], []>} : vector<16x256xf32>, vector<256x64xf32>, vector<16x64xf32> -> vector<16x64xf32>
    %c0_78 = arith.constant 0 : index
    %c0_79 = arith.constant 0 : index
    %c0_80 = arith.constant 0 : index
    %164 = vector.load %arg16[%c0_78, %c0_79, %c0_80] : memref<1x1x64xf32, #tpu.memory_space<vmem>>, vector<1x1x64xf32>
    %165 = vector.shape_cast %164 : vector<1x1x64xf32> to vector<1x64xf32>
    %166 = vector.broadcast %165 : vector<1x64xf32> to vector<16x64xf32>
    %167 = arith.addf %163, %166 : vector<16x64xf32>
    %168 = arith.addf %167, %151 : vector<16x64xf32>
    %c0_81 = arith.constant 0 : index
    %c0_82 = arith.constant 0 : index
    %c0_83 = arith.constant 0 : index
    %169 = vector.load %arg17[%c0_81, %c0_82, %c0_83] : memref<1x1x64xf32, #tpu.memory_space<vmem>>, vector<1x1x64xf32>
    %170 = vector.shape_cast %169 : vector<1x1x64xf32> to vector<1x64xf32>
    %c0_84 = arith.constant 0 : index
    %c0_85 = arith.constant 0 : index
    %c0_86 = arith.constant 0 : index
    %171 = vector.load %arg18[%c0_84, %c0_85, %c0_86] : memref<1x1x64xf32, #tpu.memory_space<vmem>>, vector<1x1x64xf32>
    %172 = vector.shape_cast %171 : vector<1x1x64xf32> to vector<1x64xf32>
    %cst_87 = arith.constant dense<0.000000e+00> : vector<16xf32>
    %173 = vector.multi_reduction <add>, %168, %cst_87 [1] : vector<16x64xf32> to vector<16xf32>
    %174 = vector.shape_cast %173 : vector<16xf32> to vector<16x1xf32>
    %cst_88 = arith.constant 6.400000e+01 : f32
    %175 = vector.broadcast %cst_88 : f32 to vector<16x1xf32>
    %176 = arith.divf %174, %175 : vector<16x1xf32>
    %177 = vector.broadcast %176 : vector<16x1xf32> to vector<16x64xf32>
    %178 = arith.subf %168, %177 : vector<16x64xf32>
    %179 = arith.mulf %178, %178 : vector<16x64xf32>
    %cst_89 = arith.constant dense<0.000000e+00> : vector<16xf32>
    %180 = vector.multi_reduction <add>, %179, %cst_89 [1] : vector<16x64xf32> to vector<16xf32>
    %181 = vector.shape_cast %180 : vector<16xf32> to vector<16x1xf32>
    %cst_90 = arith.constant 6.400000e+01 : f32
    %182 = vector.broadcast %cst_90 : f32 to vector<16x1xf32>
    %183 = arith.divf %181, %182 : vector<16x1xf32>
    %184 = vector.broadcast %176 : vector<16x1xf32> to vector<16x64xf32>
    %185 = arith.subf %168, %184 : vector<16x64xf32>
    %cst_91 = arith.constant 9.99999974E-6 : f32
    %186 = vector.broadcast %cst_91 : f32 to vector<16x1xf32>
    %187 = arith.addf %183, %186 : vector<16x1xf32>
    %188 = math.rsqrt %187 : vector<16x1xf32>
    %189 = vector.broadcast %188 : vector<16x1xf32> to vector<16x64xf32>
    %190 = arith.mulf %185, %189 : vector<16x64xf32>
    %191 = vector.broadcast %170 : vector<1x64xf32> to vector<16x64xf32>
    %192 = arith.mulf %190, %191 : vector<16x64xf32>
    %193 = vector.broadcast %172 : vector<1x64xf32> to vector<16x64xf32>
    %194 = arith.addf %192, %193 : vector<16x64xf32>
    %c0_92 = arith.constant 0 : index
    %c0_93 = arith.constant 0 : index
    %195 = vector.load %arg22[%c0_92, %c0_93] : memref<16x64xf32, #tpu.memory_space<vmem>>, vector<16x64xf32>
    tpu.vector_store %arg22[%c0_92, %c0_93], %194 {strides = array<i32>} : memref<16x64xf32, #tpu.memory_space<vmem>>, vector<16x64xf32>,
    %c7_i32 = arith.constant 7 : i32
    %196 = arith.cmpi eq, %arg0, %c7_i32 : i32
    %197 = arith.extui %196 : i1 to i32
    %c0_i32_94 = arith.constant 0 : i32
    %198 = arith.cmpi ne, %197, %c0_i32_94 : i32
    scf.if %198 {
      %c0_95 = arith.constant 0 : index
      %c0_96 = arith.constant 0 : index
      %199 = vector.load %arg19[%c0_95, %c0_96] : memref<64x128xf32, #tpu.memory_space<vmem>>, vector<64x128xf32>
      %cst_97 = arith.constant dense<0.000000e+00> : vector<16x128xf32>
      %200 = tpu.matmul %194, %199, %cst_97 {dimension_numbers = #tpu.dot_dimension_numbers<[1], [0], [0], [1], [0, 0, 1, 1], [], []>} : vector<16x64xf32>, vector<64x128xf32>, vector<16x128xf32> -> vector<16x128xf32>
      %c0_98 = arith.constant 0 : index
      %c0_99 = arith.constant 0 : index
      %201 = vector.load %arg20[%c0_98, %c0_99] : memref<1x128xf32, #tpu.memory_space<vmem>>, vector<1x128xf32>
      %202 = vector.broadcast %201 : vector<1x128xf32> to vector<16x128xf32>
      %203 = arith.addf %200, %202 : vector<16x128xf32>
      %c0_100 = arith.constant 0 : index
      %c0_101 = arith.constant 0 : index
      %204 = vector.load %arg21[%c0_100, %c0_101] : memref<16x128xf32, #tpu.memory_space<vmem>>, vector<16x128xf32>
      tpu.vector_store %arg21[%c0_100, %c0_101], %203 {strides = array<i32>} : memref<16x128xf32, #tpu.memory_space<vmem>>, vector<16x128xf32>,
    } else {
    }
    return
  }
  func.func @transform_0(%arg0: i32) -> (i32, i32) {
    %c0_i32 = arith.constant 0 : i32
    %c0_i32_0 = arith.constant 0 : i32
    %c0_i32_1 = arith.constant 0 : i32
    return %c0_i32, %c0_i32_0 : i32, i32
  }
  func.func @transform_1(%arg0: i32) -> (i32, i32) {
    %c0_i32 = arith.constant 0 : i32
    %c0_i32_0 = arith.constant 0 : i32
    %c0_i32_1 = arith.constant 0 : i32
    return %c0_i32, %c0_i32_0 : i32, i32
  }
  func.func @transform_2(%arg0: i32) -> (i32, i32, i32) {
    %c0_i32 = arith.constant 0 : i32
    %c0_i32_0 = arith.constant 0 : i32
    %c0_i32_1 = arith.constant 0 : i32
    return %arg0, %c0_i32, %c0_i32_0 : i32, i32, i32
  }
  func.func @transform_3(%arg0: i32) -> (i32, i32, i32) {
    %c0_i32 = arith.constant 0 : i32
    %c0_i32_0 = arith.constant 0 : i32
    %c0_i32_1 = arith.constant 0 : i32
    return %arg0, %c0_i32, %c0_i32_0 : i32, i32, i32
  }
  func.func @transform_4(%arg0: i32) -> (i32, i32, i32) {
    %c0_i32 = arith.constant 0 : i32
    %c0_i32_0 = arith.constant 0 : i32
    %c0_i32_1 = arith.constant 0 : i32
    return %arg0, %c0_i32, %c0_i32_0 : i32, i32, i32
  }
  func.func @transform_5(%arg0: i32) -> (i32, i32, i32) {
    %c0_i32 = arith.constant 0 : i32
    %c0_i32_0 = arith.constant 0 : i32
    %c0_i32_1 = arith.constant 0 : i32
    return %arg0, %c0_i32, %c0_i32_0 : i32, i32, i32
  }
  func.func @transform_6(%arg0: i32) -> (i32, i32, i32) {
    %c0_i32 = arith.constant 0 : i32
    %c0_i32_0 = arith.constant 0 : i32
    %c0_i32_1 = arith.constant 0 : i32
    return %arg0, %c0_i32, %c0_i32_0 : i32, i32, i32
  }
  func.func @transform_7(%arg0: i32) -> (i32, i32, i32) {
    %c0_i32 = arith.constant 0 : i32
    %c0_i32_0 = arith.constant 0 : i32
    %c0_i32_1 = arith.constant 0 : i32
    return %arg0, %c0_i32, %c0_i32_0 : i32, i32, i32
  }
  func.func @transform_8(%arg0: i32) -> (i32, i32, i32) {
    %c0_i32 = arith.constant 0 : i32
    %c0_i32_0 = arith.constant 0 : i32
    %c0_i32_1 = arith.constant 0 : i32
    return %arg0, %c0_i32, %c0_i32_0 : i32, i32, i32
  }
  func.func @transform_9(%arg0: i32) -> (i32, i32, i32) {
    %c0_i32 = arith.constant 0 : i32
    %c0_i32_0 = arith.constant 0 : i32
    %c0_i32_1 = arith.constant 0 : i32
    return %arg0, %c0_i32, %c0_i32_0 : i32, i32, i32
  }
  func.func @transform_10(%arg0: i32) -> (i32, i32, i32) {
    %c0_i32 = arith.constant 0 : i32
    %c0_i32_0 = arith.constant 0 : i32
    %c0_i32_1 = arith.constant 0 : i32
    return %arg0, %c0_i32, %c0_i32_0 : i32, i32, i32
  }
  func.func @transform_11(%arg0: i32) -> (i32, i32, i32) {
    %c0_i32 = arith.constant 0 : i32
    %c0_i32_0 = arith.constant 0 : i32
    %c0_i32_1 = arith.constant 0 : i32
    return %arg0, %c0_i32, %c0_i32_0 : i32, i32, i32
  }
  func.func @transform_12(%arg0: i32) -> (i32, i32, i32) {
    %c0_i32 = arith.constant 0 : i32
    %c0_i32_0 = arith.constant 0 : i32
    %c0_i32_1 = arith.constant 0 : i32
    return %arg0, %c0_i32, %c0_i32_0 : i32, i32, i32
  }
  func.func @transform_13(%arg0: i32) -> (i32, i32, i32) {
    %c0_i32 = arith.constant 0 : i32
    %c0_i32_0 = arith.constant 0 : i32
    %c0_i32_1 = arith.constant 0 : i32
    return %arg0, %c0_i32, %c0_i32_0 : i32, i32, i32
  }
  func.func @transform_14(%arg0: i32) -> (i32, i32, i32) {
    %c0_i32 = arith.constant 0 : i32
    %c0_i32_0 = arith.constant 0 : i32
    %c0_i32_1 = arith.constant 0 : i32
    return %arg0, %c0_i32, %c0_i32_0 : i32, i32, i32
  }
  func.func @transform_15(%arg0: i32) -> (i32, i32, i32) {
    %c0_i32 = arith.constant 0 : i32
    %c0_i32_0 = arith.constant 0 : i32
    %c0_i32_1 = arith.constant 0 : i32
    return %arg0, %c0_i32, %c0_i32_0 : i32, i32, i32
  }
  func.func @transform_16(%arg0: i32) -> (i32, i32, i32) {
    %c0_i32 = arith.constant 0 : i32
    %c0_i32_0 = arith.constant 0 : i32
    %c0_i32_1 = arith.constant 0 : i32
    return %arg0, %c0_i32, %c0_i32_0 : i32, i32, i32
  }
  func.func @transform_17(%arg0: i32) -> (i32, i32, i32) {
    %c0_i32 = arith.constant 0 : i32
    %c0_i32_0 = arith.constant 0 : i32
    %c0_i32_1 = arith.constant 0 : i32
    return %arg0, %c0_i32, %c0_i32_0 : i32, i32, i32
  }
  func.func @transform_18(%arg0: i32) -> (i32, i32) {
    %c0_i32 = arith.constant 0 : i32
    %c0_i32_0 = arith.constant 0 : i32
    %c0_i32_1 = arith.constant 0 : i32
    return %c0_i32, %c0_i32_0 : i32, i32
  }
  func.func @transform_19(%arg0: i32) -> (i32, i32) {
    %c0_i32 = arith.constant 0 : i32
    %c0_i32_0 = arith.constant 0 : i32
    %c0_i32_1 = arith.constant 0 : i32
    return %c0_i32, %c0_i32_0 : i32, i32
  }
  func.func @transform_20(%arg0: i32) -> (i32, i32) {
    %c0_i32 = arith.constant 0 : i32
    %c0_i32_0 = arith.constant 0 : i32
    %c0_i32_1 = arith.constant 0 : i32
    return %c0_i32, %c0_i32_0 : i32, i32
  }
}

</mosaic_0001>

<llo_original>
// kernel: forward.1
$region0: #{forward.1}
  #allocation0 [shape = 'u32[]', space=smem, size = 0x4, offset = 0x4, fixed_abs, tag = 'smem constant byte address 0x4 - core index']
  #allocation1 [shape = 'u32[72,128]{1,0:T(1,128)}', space=vmem, size = 0x9000, scoped, tag = 'internal scratch']
  #allocation2 [shape = 'f32[16,64]{1,0:T(8,128)}', space=vmem, size = 0x2000, scoped, tag = 'scratch operand']
  %s0 = inlined_call_operand.vmem [shape: f32[16,64], index: 0, kind: input, shape index: {}]
  %s1 = inlined_call_operand.vmem [shape: f32[8,8], index: 1, kind: input, shape index: {}]
  %s2 = inlined_call_operand.vmem [shape: f32[8,64,64], index: 2, kind: input, shape index: {}]
  %s3 = inlined_call_operand.vmem [shape: f32[8,1,64], index: 3, kind: input, shape index: {}]
  %s4 = inlined_call_operand.vmem [shape: f32[8,64,64], index: 4, kind: input, shape index: {}]
  %s5 = inlined_call_operand.vmem [shape: f32[8,1,64], index: 5, kind: input, shape index: {}]
  %s6 = inlined_call_operand.vmem [shape: f32[8,64,64], index: 6, kind: input, shape index: {}]
  %s7 = inlined_call_operand.vmem [shape: f32[8,1,64], index: 7, kind: input, shape index: {}]
  %s8 = inlined_call_operand.vmem [shape: f32[8,64,64], index: 8, kind: input, shape index: {}]
  %s9 = inlined_call_operand.vmem [shape: f32[8,1,64], index: 9, kind: input, shape index: {}]
  %s10 = inlined_call_operand.vmem [shape: f32[8,1,64], index: 10, kind: input, shape index: {}]
  %s11 = inlined_call_operand.vmem [shape: f32[8,1,64], index: 11, kind: input, shape index: {}]
  %s12 = inlined_call_operand.vmem [shape: f32[8,64,256], index: 12, kind: input, shape index: {}]
  %s13 = inlined_call_operand.vmem [shape: f32[8,1,256], index: 13, kind: input, shape index: {}]
  %s14 = inlined_call_operand.vmem [shape: f32[8,256,64], index: 14, kind: input, shape index: {}]
  %s15 = inlined_call_operand.vmem [shape: f32[8,1,64], index: 15, kind: input, shape index: {}]
  %s16 = inlined_call_operand.vmem [shape: f32[8,1,64], index: 16, kind: input, shape index: {}]
  %s17 = inlined_call_operand.vmem [shape: f32[8,1,64], index: 17, kind: input, shape index: {}]
  %s18 = inlined_call_operand.vmem [shape: f32[64,128], index: 18, kind: input, shape index: {}]
  %s19 = inlined_call_operand.vmem [shape: f32[1,128], index: 19, kind: input, shape index: {}]
  %s20 = inlined_call_operand.hbm [shape: f32[16,128], index: 20, kind: output, shape index: {}]
  %s21 = sld [smem:[#allocation0]]
  $region121: #{forward.1} parent=0
    _
  %s23 = ssub.s32 1, %s21
  %s24 = scalar_select 0, %s23, %s21
  $region1: #{forward.1} parent=0
    #allocation3 [shape = 'u8[8192]{0}', space=vmem, size = 0x2000, scoped, tag = 'output window, operand 0, single buffered']
    #allocation4 [shape = 's32[2]{0}', space=sflag, size = 0x8, scoped, tag = 'scoped memory for forward.1']
    %25 = vsyncpa [#allocation4], 0
    loop: start=0, step=1, limit=10
    $region2: #{forward.1} parent=1 // loop_pre_header
      _
    $region3: #{forward.1} parent=1 // loop_header
      %s27 = sphi 0, %s31
      %p28 = scmp.ge.s32.totalorder %s27, 10
      %s35 = sphi 0, %s35
      %s37 = sphi 0, %s35
      %s38 = sphi 0, %s37
      %s52 = sphi 0, %s38
      %s56 = sphi 0, %s56
      %s58 = sphi 0, %s56
      %s59 = sphi 0, %s58
      %s73 = sphi 0, %s59
      %s79 = sphi 0, %s81
      %s82 = sphi 0, %s79
      %s83 = sphi 0, %s82
      %s99 = sphi 0, %s83
      %s105 = sphi 0, %s107
      %s108 = sphi 0, %s105
      %s109 = sphi 0, %s108
      %s125 = sphi 0, %s109
      %s131 = sphi 0, %s133
      %s134 = sphi 0, %s131
      %s135 = sphi 0, %s134
      %s151 = sphi 0, %s135
      %s157 = sphi 0, %s159
      %s160 = sphi 0, %s157
      %s161 = sphi 0, %s160
      %s177 = sphi 0, %s161
      %s183 = sphi 0, %s185
      %s186 = sphi 0, %s183
      %s187 = sphi 0, %s186
      %s203 = sphi 0, %s187
      %s209 = sphi 0, %s211
      %s212 = sphi 0, %s209
      %s213 = sphi 0, %s212
      %s229 = sphi 0, %s213
      %s235 = sphi 0, %s237
      %s238 = sphi 0, %s235
      %s239 = sphi 0, %s238
      %s255 = sphi 0, %s239
      %s261 = sphi 0, %s263
      %s264 = sphi 0, %s261
      %s265 = sphi 0, %s264
      %s281 = sphi 0, %s265
      %s287 = sphi 0, %s289
      %s290 = sphi 0, %s287
      %s291 = sphi 0, %s290
      %s307 = sphi 0, %s291
      %s313 = sphi 0, %s315
      %s316 = sphi 0, %s313
      %s317 = sphi 0, %s316
      %s333 = sphi 0, %s317
      %s339 = sphi 0, %s341
      %s342 = sphi 0, %s339
      %s343 = sphi 0, %s342
      %s359 = sphi 0, %s343
      %s365 = sphi 0, %s367
      %s368 = sphi 0, %s365
      %s369 = sphi 0, %s368
      %s385 = sphi 0, %s369
      %s391 = sphi 0, %s393
      %s394 = sphi 0, %s391
      %s395 = sphi 0, %s394
      %s411 = sphi 0, %s395
      %s417 = sphi 0, %s419
      %s420 = sphi 0, %s417
      %s421 = sphi 0, %s420
      %s437 = sphi 0, %s421
      %s443 = sphi 0, %s445
      %s446 = sphi 0, %s443
      %s447 = sphi 0, %s446
      %s463 = sphi 0, %s447
      %s469 = sphi 0, %s471
      %s472 = sphi 0, %s469
      %s473 = sphi 0, %s472
      %s489 = sphi 0, %s473
      %s493 = sphi 0, %s493
      %s495 = sphi 0, %s493
      %s496 = sphi 0, %s495
      %s510 = sphi 0, %s496
      %s514 = sphi 0, %s514
      %s516 = sphi 0, %s514
      %s517 = sphi 0, %s516
      %s531 = sphi 0, %s517
      %s535 = sphi 0, %s535
      %s537 = sphi 0, %s535
      %s538 = sphi 0, %s537
      %s552 = sphi 0, %s538
    $region4: #{forward.1} parent=1 // loop_header_branch
      %30 = sbr.rel (%p28) target = $region8
    $region5: #{forward.1} parent=1 // loop_body
      %s32 = ssub.s32 %s27, 1
      %s33 = ssub.s32 %s27, 2
      %s34 = sadd.s32 %s27, 1
      %s36 = sadd.s32 %s35, 1
      %p39 = scmp.eq.s32.totalorder %s27, 7
      %p40 = scmp.ne.s32.totalorder %s35, %s37
      %p41 = scmp.eq.s32.totalorder %s27, 0
      %p42 = por %p40, %p41
      %p43 = scmp.ne.s32.totalorder %s35, %s37
      %p44 = scmp.eq.s32.totalorder %s32, 7
      %p45 = por %p43, %p44
      %p46 = scmp.ne.s32.totalorder %s37, %s38
      %p47 = scmp.eq.s32.totalorder %s32, 0
      %p48 = por %p46, %p47
      %p49 = scmp.ne.s32.totalorder %s37, %s38
      %p50 = scmp.eq.s32.totalorder %s33, 7
      %p51 = por %p49, %p50
      %p53 = scmp.ne.s32.totalorder %s38, %s52
      %p54 = scmp.eq.s32.totalorder %s33, 0
      %p55 = por %p53, %p54
      %s57 = sadd.s32 %s56, 1
      %p60 = scmp.eq.s32.totalorder %s27, 7
      %p61 = scmp.ne.s32.totalorder %s56, %s58
      %p62 = scmp.eq.s32.totalorder %s27, 0
      %p63 = por %p61, %p62
      %p64 = scmp.ne.s32.totalorder %s56, %s58
      %p65 = scmp.eq.s32.totalorder %s32, 7
      %p66 = por %p64, %p65
      %p67 = scmp.ne.s32.totalorder %s58, %s59
      %p68 = scmp.eq.s32.totalorder %s32, 0
      %p69 = por %p67, %p68
      %p70 = scmp.ne.s32.totalorder %s58, %s59
      %p71 = scmp.eq.s32.totalorder %s33, 7
      %p72 = por %p70, %p71
      %p74 = scmp.ne.s32.totalorder %s59, %s73
      %p75 = scmp.eq.s32.totalorder %s33, 0
      %p76 = por %p74, %p75
      %s77 = ssub.s32 %s27, %s34
      %p78 = scmp.eq.s32.totalorder %s77, 0
      %s80 = sadd.s32 %s79, 1
      %s81 = scalar_select %p78, %s79, %s80
      %p84 = pneg %p78
      %p85 = scmp.eq.s32.totalorder %s27, 7
      %p86 = por %p84, %p85
      %p87 = scmp.ne.s32.totalorder %s79, %s82
      %p88 = scmp.eq.s32.totalorder %s27, 0
      %p89 = por %p87, %p88
      %p90 = scmp.ne.s32.totalorder %s79, %s82
      %p91 = scmp.eq.s32.totalorder %s32, 7
      %p92 = por %p90, %p91
      %p93 = scmp.ne.s32.totalorder %s82, %s83
      %p94 = scmp.eq.s32.totalorder %s32, 0
      %p95 = por %p93, %p94
      %p96 = scmp.ne.s32.totalorder %s82, %s83
      %p97 = scmp.eq.s32.totalorder %s33, 7
      %p98 = por %p96, %p97
      %p100 = scmp.ne.s32.totalorder %s83, %s99
      %p101 = scmp.eq.s32.totalorder %s33, 0
      %p102 = por %p100, %p101
      %s103 = ssub.s32 %s27, %s34
      %p104 = scmp.eq.s32.totalorder %s103, 0
      %s106 = sadd.s32 %s105, 1
      %s107 = scalar_select %p104, %s105, %s106
      %p110 = pneg %p104
      %p111 = scmp.eq.s32.totalorder %s27, 7
      %p112 = por %p110, %p111
      %p113 = scmp.ne.s32.totalorder %s105, %s108
      %p114 = scmp.eq.s32.totalorder %s27, 0
      %p115 = por %p113, %p114
      %p116 = scmp.ne.s32.totalorder %s105, %s108
      %p117 = scmp.eq.s32.totalorder %s32, 7
      %p118 = por %p116, %p117
      %p119 = scmp.ne.s32.totalorder %s108, %s109
      %p120 = scmp.eq.s32.totalorder %s32, 0
      %p121 = por %p119, %p120
      %p122 = scmp.ne.s32.totalorder %s108, %s109
      %p123 = scmp.eq.s32.totalorder %s33, 7
      %p124 = por %p122, %p123
      %p126 = scmp.ne.s32.totalorder %s109, %s125
      %p127 = scmp.eq.s32.totalorder %s33, 0
      %p128 = por %p126, %p127
      %s129 = ssub.s32 %s27, %s34
      %p130 = scmp.eq.s32.totalorder %s129, 0
      %s132 = sadd.s32 %s131, 1
      %s133 = scalar_select %p130, %s131, %s132
      %p136 = pneg %p130
      %p137 = scmp.eq.s32.totalorder %s27, 7
      %p138 = por %p136, %p137
      %p139 = scmp.ne.s32.totalorder %s131, %s134
      %p140 = scmp.eq.s32.totalorder %s27, 0
      %p141 = por %p139, %p140
      %p142 = scmp.ne.s32.totalorder %s131, %s134
      %p143 = scmp.eq.s32.totalorder %s32, 7
      %p144 = por %p142, %p143
      %p145 = scmp.ne.s32.totalorder %s134, %s135
      %p146 = scmp.eq.s32.totalorder %s32, 0
      %p147 = por %p145, %p146
      %p148 = scmp.ne.s32.totalorder %s134, %s135
      %p149 = scmp.eq.s32.totalorder %s33, 7
      %p150 = por %p148, %p149
      %p152 = scmp.ne.s32.totalorder %s135, %s151
      %p153 = scmp.eq.s32.totalorder %s33, 0
      %p154 = por %p152, %p153
      %s155 = ssub.s32 %s27, %s34
      %p156 = scmp.eq.s32.totalorder %s155, 0
      %s158 = sadd.s32 %s157, 1
      %s159 = scalar_select %p156, %s157, %s158
      %p162 = pneg %p156
      %p163 = scmp.eq.s32.totalorder %s27, 7
      %p164 = por %p162, %p163
      %p165 = scmp.ne.s32.totalorder %s157, %s160
      %p166 = scmp.eq.s32.totalorder %s27, 0
      %p167 = por %p165, %p166
      %p168 = scmp.ne.s32.totalorder %s157, %s160
      %p169 = scmp.eq.s32.totalorder %s32, 7
      %p170 = por %p168, %p169
      %p171 = scmp.ne.s32.totalorder %s160, %s161
      %p172 = scmp.eq.s32.totalorder %s32, 0
      %p173 = por %p171, %p172
      %p174 = scmp.ne.s32.totalorder %s160, %s161
      %p175 = scmp.eq.s32.totalorder %s33, 7
      %p176 = por %p174, %p175
      %p178 = scmp.ne.s32.totalorder %s161, %s177
      %p179 = scmp.eq.s32.totalorder %s33, 0
      %p180 = por %p178, %p179
      %s181 = ssub.s32 %s27, %s34
      %p182 = scmp.eq.s32.totalorder %s181, 0
      %s184 = sadd.s32 %s183, 1
      %s185 = scalar_select %p182, %s183, %s184
      %p188 = pneg %p182
      %p189 = scmp.eq.s32.totalorder %s27, 7
      %p190 = por %p188, %p189
      %p191 = scmp.ne.s32.totalorder %s183, %s186
      %p192 = scmp.eq.s32.totalorder %s27, 0
      %p193 = por %p191, %p192
      %p194 = scmp.ne.s32.totalorder %s183, %s186
      %p195 = scmp.eq.s32.totalorder %s32, 7
      %p196 = por %p194, %p195
      %p197 = scmp.ne.s32.totalorder %s186, %s187
      %p198 = scmp.eq.s32.totalorder %s32, 0
      %p199 = por %p197, %p198
      %p200 = scmp.ne.s32.totalorder %s186, %s187
      %p201 = scmp.eq.s32.totalorder %s33, 7
      %p202 = por %p200, %p201
      %p204 = scmp.ne.s32.totalorder %s187, %s203
      %p205 = scmp.eq.s32.totalorder %s33, 0
      %p206 = por %p204, %p205
      %s207 = ssub.s32 %s27, %s34
      %p208 = scmp.eq.s32.totalorder %s207, 0
      %s210 = sadd.s32 %s209, 1
      %s211 = scalar_select %p208, %s209, %s210
      %p214 = pneg %p208
      %p215 = scmp.eq.s32.totalorder %s27, 7
      %p216 = por %p214, %p215
      %p217 = scmp.ne.s32.totalorder %s209, %s212
      %p218 = scmp.eq.s32.totalorder %s27, 0
      %p219 = por %p217, %p218
      %p220 = scmp.ne.s32.totalorder %s209, %s212
      %p221 = scmp.eq.s32.totalorder %s32, 7
      %p222 = por %p220, %p221
      %p223 = scmp.ne.s32.totalorder %s212, %s213
      %p224 = scmp.eq.s32.totalorder %s32, 0
      %p225 = por %p223, %p224
      %p226 = scmp.ne.s32.totalorder %s212, %s213
      %p227 = scmp.eq.s32.totalorder %s33, 7
      %p228 = por %p226, %p227
      %p230 = scmp.ne.s32.totalorder %s213, %s229
      %p231 = scmp.eq.s32.totalorder %s33, 0
      %p232 = por %p230, %p231
      %s233 = ssub.s32 %s27, %s34
      %p234 = scmp.eq.s32.totalorder %s233, 0
      %s236 = sadd.s32 %s235, 1
      %s237 = scalar_select %p234, %s235, %s236
      %p240 = pneg %p234
      %p241 = scmp.eq.s32.totalorder %s27, 7
      %p242 = por %p240, %p241
      %p243 = scmp.ne.s32.totalorder %s235, %s238
      %p244 = scmp.eq.s32.totalorder %s27, 0
      %p245 = por %p243, %p244
      %p246 = scmp.ne.s32.totalorder %s235, %s238
      %p247 = scmp.eq.s32.totalorder %s32, 7
      %p248 = por %p246, %p247
      %p249 = scmp.ne.s32.totalorder %s238, %s239
      %p250 = scmp.eq.s32.totalorder %s32, 0
      %p251 = por %p249, %p250
      %p252 = scmp.ne.s32.totalorder %s238, %s239
      %p253 = scmp.eq.s32.totalorder %s33, 7
      %p254 = por %p252, %p253
      %p256 = scmp.ne.s32.totalorder %s239, %s255
      %p257 = scmp.eq.s32.totalorder %s33, 0
      %p258 = por %p256, %p257
      %s259 = ssub.s32 %s27, %s34
      %p260 = scmp.eq.s32.totalorder %s259, 0
      %s262 = sadd.s32 %s261, 1
      %s263 = scalar_select %p260, %s261, %s262
      %p266 = pneg %p260
      %p267 = scmp.eq.s32.totalorder %s27, 7
      %p268 = por %p266, %p267
      %p269 = scmp.ne.s32.totalorder %s261, %s264
      %p270 = scmp.eq.s32.totalorder %s27, 0
      %p271 = por %p269, %p270
      %p272 = scmp.ne.s32.totalorder %s261, %s264
      %p273 = scmp.eq.s32.totalorder %s32, 7
      %p274 = por %p272, %p273
      %p275 = scmp.ne.s32.totalorder %s264, %s265
      %p276 = scmp.eq.s32.totalorder %s32, 0
      %p277 = por %p275, %p276
      %p278 = scmp.ne.s32.totalorder %s264, %s265
      %p279 = scmp.eq.s32.totalorder %s33, 7
      %p280 = por %p278, %p279
      %p282 = scmp.ne.s32.totalorder %s265, %s281
      %p283 = scmp.eq.s32.totalorder %s33, 0
      %p284 = por %p282, %p283
      %s285 = ssub.s32 %s27, %s34
      %p286 = scmp.eq.s32.totalorder %s285, 0
      %s288 = sadd.s32 %s287, 1
      %s289 = scalar_select %p286, %s287, %s288
      %p292 = pneg %p286
      %p293 = scmp.eq.s32.totalorder %s27, 7
      %p294 = por %p292, %p293
      %p295 = scmp.ne.s32.totalorder %s287, %s290
      %p296 = scmp.eq.s32.totalorder %s27, 0
      %p297 = por %p295, %p296
      %p298 = scmp.ne.s32.totalorder %s287, %s290
      %p299 = scmp.eq.s32.totalorder %s32, 7
      %p300 = por %p298, %p299
      %p301 = scmp.ne.s32.totalorder %s290, %s291
      %p302 = scmp.eq.s32.totalorder %s32, 0
      %p303 = por %p301, %p302
      %p304 = scmp.ne.s32.totalorder %s290, %s291
      %p305 = scmp.eq.s32.totalorder %s33, 7
      %p306 = por %p304, %p305
      %p308 = scmp.ne.s32.totalorder %s291, %s307
      %p309 = scmp.eq.s32.totalorder %s33, 0
      %p310 = por %p308, %p309
      %s311 = ssub.s32 %s27, %s34
      %p312 = scmp.eq.s32.totalorder %s311, 0
      %s314 = sadd.s32 %s313, 1
      %s315 = scalar_select %p312, %s313, %s314
      %p318 = pneg %p312
      %p319 = scmp.eq.s32.totalorder %s27, 7
      %p320 = por %p318, %p319
      %p321 = scmp.ne.s32.totalorder %s313, %s316
      %p322 = scmp.eq.s32.totalorder %s27, 0
      %p323 = por %p321, %p322
      %p324 = scmp.ne.s32.totalorder %s313, %s316
      %p325 = scmp.eq.s32.totalorder %s32, 7
      %p326 = por %p324, %p325
      %p327 = scmp.ne.s32.totalorder %s316, %s317
      %p328 = scmp.eq.s32.totalorder %s32, 0
      %p329 = por %p327, %p328
      %p330 = scmp.ne.s32.totalorder %s316, %s317
      %p331 = scmp.eq.s32.totalorder %s33, 7
      %p332 = por %p330, %p331
      %p334 = scmp.ne.s32.totalorder %s317, %s333
      %p335 = scmp.eq.s32.totalorder %s33, 0
      %p336 = por %p334, %p335
      %s337 = ssub.s32 %s27, %s34
      %p338 = scmp.eq.s32.totalorder %s337, 0
      %s340 = sadd.s32 %s339, 1
      %s341 = scalar_select %p338, %s339, %s340
      %p344 = pneg %p338
      %p345 = scmp.eq.s32.totalorder %s27, 7
      %p346 = por %p344, %p345
      %p347 = scmp.ne.s32.totalorder %s339, %s342
      %p348 = scmp.eq.s32.totalorder %s27, 0
      %p349 = por %p347, %p348
      %p350 = scmp.ne.s32.totalorder %s339, %s342
      %p351 = scmp.eq.s32.totalorder %s32, 7
      %p352 = por %p350, %p351
      %p353 = scmp.ne.s32.totalorder %s342, %s343
      %p354 = scmp.eq.s32.totalorder %s32, 0
      %p355 = por %p353, %p354
      %p356 = scmp.ne.s32.totalorder %s342, %s343
      %p357 = scmp.eq.s32.totalorder %s33, 7
      %p358 = por %p356, %p357
      %p360 = scmp.ne.s32.totalorder %s343, %s359
      %p361 = scmp.eq.s32.totalorder %s33, 0
      %p362 = por %p360, %p361
      %s363 = ssub.s32 %s27, %s34
      %p364 = scmp.eq.s32.totalorder %s363, 0
      %s366 = sadd.s32 %s365, 1
      %s367 = scalar_select %p364, %s365, %s366
      %p370 = pneg %p364
      %p371 = scmp.eq.s32.totalorder %s27, 7
      %p372 = por %p370, %p371
      %p373 = scmp.ne.s32.totalorder %s365, %s368
      %p374 = scmp.eq.s32.totalorder %s27, 0
      %p375 = por %p373, %p374
      %p376 = scmp.ne.s32.totalorder %s365, %s368
      %p377 = scmp.eq.s32.totalorder %s32, 7
      %p378 = por %p376, %p377
      %p379 = scmp.ne.s32.totalorder %s368, %s369
      %p380 = scmp.eq.s32.totalorder %s32, 0
      %p381 = por %p379, %p380
      %p382 = scmp.ne.s32.totalorder %s368, %s369
      %p383 = scmp.eq.s32.totalorder %s33, 7
      %p384 = por %p382, %p383
      %p386 = scmp.ne.s32.totalorder %s369, %s385
      %p387 = scmp.eq.s32.totalorder %s33, 0
      %p388 = por %p386, %p387
      %s389 = ssub.s32 %s27, %s34
      %p390 = scmp.eq.s32.totalorder %s389, 0
      %s392 = sadd.s32 %s391, 1
      %s393 = scalar_select %p390, %s391, %s392
      %p396 = pneg %p390
      %p397 = scmp.eq.s32.totalorder %s27, 7
      %p398 = por %p396, %p397
      %p399 = scmp.ne.s32.totalorder %s391, %s394
      %p400 = scmp.eq.s32.totalorder %s27, 0
      %p401 = por %p399, %p400
      %p402 = scmp.ne.s32.totalorder %s391, %s394
      %p403 = scmp.eq.s32.totalorder %s32, 7
      %p404 = por %p402, %p403
      %p405 = scmp.ne.s32.totalorder %s394, %s395
      %p406 = scmp.eq.s32.totalorder %s32, 0
      %p407 = por %p405, %p406
      %p408 = scmp.ne.s32.totalorder %s394, %s395
      %p409 = scmp.eq.s32.totalorder %s33, 7
      %p410 = por %p408, %p409
      %p412 = scmp.ne.s32.totalorder %s395, %s411
      %p413 = scmp.eq.s32.totalorder %s33, 0
      %p414 = por %p412, %p413
      %s415 = ssub.s32 %s27, %s34
      %p416 = scmp.eq.s32.totalorder %s415, 0
      %s418 = sadd.s32 %s417, 1
      %s419 = scalar_select %p416, %s417, %s418
      %p422 = pneg %p416
      %p423 = scmp.eq.s32.totalorder %s27, 7
      %p424 = por %p422, %p423
      %p425 = scmp.ne.s32.totalorder %s417, %s420
      %p426 = scmp.eq.s32.totalorder %s27, 0
      %p427 = por %p425, %p426
      %p428 = scmp.ne.s32.totalorder %s417, %s420
      %p429 = scmp.eq.s32.totalorder %s32, 7
      %p430 = por %p428, %p429
      %p431 = scmp.ne.s32.totalorder %s420, %s421
      %p432 = scmp.eq.s32.totalorder %s32, 0
      %p433 = por %p431, %p432
      %p434 = scmp.ne.s32.totalorder %s420, %s421
      %p435 = scmp.eq.s32.totalorder %s33, 7
      %p436 = por %p434, %p435
      %p438 = scmp.ne.s32.totalorder %s421, %s437
      %p439 = scmp.eq.s32.totalorder %s33, 0
      %p440 = por %p438, %p439
      %s441 = ssub.s32 %s27, %s34
      %p442 = scmp.eq.s32.totalorder %s441, 0
      %s444 = sadd.s32 %s443, 1
      %s445 = scalar_select %p442, %s443, %s444
      %p448 = pneg %p442
      %p449 = scmp.eq.s32.totalorder %s27, 7
      %p450 = por %p448, %p449
      %p451 = scmp.ne.s32.totalorder %s443, %s446
      %p452 = scmp.eq.s32.totalorder %s27, 0
      %p453 = por %p451, %p452
      %p454 = scmp.ne.s32.totalorder %s443, %s446
      %p455 = scmp.eq.s32.totalorder %s32, 7
      %p456 = por %p454, %p455
      %p457 = scmp.ne.s32.totalorder %s446, %s447
      %p458 = scmp.eq.s32.totalorder %s32, 0
      %p459 = por %p457, %p458
      %p460 = scmp.ne.s32.totalorder %s446, %s447
      %p461 = scmp.eq.s32.totalorder %s33, 7
      %p462 = por %p460, %p461
      %p464 = scmp.ne.s32.totalorder %s447, %s463
      %p465 = scmp.eq.s32.totalorder %s33, 0
      %p466 = por %p464, %p465
      %s467 = ssub.s32 %s27, %s34
      %p468 = scmp.eq.s32.totalorder %s467, 0
      %s470 = sadd.s32 %s469, 1
      %s471 = scalar_select %p468, %s469, %s470
      %p474 = pneg %p468
      %p475 = scmp.eq.s32.totalorder %s27, 7
      %p476 = por %p474, %p475
      %p477 = scmp.ne.s32.totalorder %s469, %s472
      %p478 = scmp.eq.s32.totalorder %s27, 0
      %p479 = por %p477, %p478
      %p480 = scmp.ne.s32.totalorder %s469, %s472
      %p481 = scmp.eq.s32.totalorder %s32, 7
      %p482 = por %p480, %p481
      %p483 = scmp.ne.s32.totalorder %s472, %s473
      %p484 = scmp.eq.s32.totalorder %s32, 0
      %p485 = por %p483, %p484
      %p486 = scmp.ne.s32.totalorder %s472, %s473
      %p487 = scmp.eq.s32.totalorder %s33, 7
      %p488 = por %p486, %p487
      %p490 = scmp.ne.s32.totalorder %s473, %s489
      %p491 = scmp.eq.s32.totalorder %s33, 0
      %p492 = por %p490, %p491
      %s494 = sadd.s32 %s493, 1
      %p497 = scmp.eq.s32.totalorder %s27, 7
      %p498 = scmp.ne.s32.totalorder %s493, %s495
      %p499 = scmp.eq.s32.totalorder %s27, 0
      %p500 = por %p498, %p499
      %p501 = scmp.ne.s32.totalorder %s493, %s495
      %p502 = scmp.eq.s32.totalorder %s32, 7
      %p503 = por %p501, %p502
      %p504 = scmp.ne.s32.totalorder %s495, %s496
      %p505 = scmp.eq.s32.totalorder %s32, 0
      %p506 = por %p504, %p505
      %p507 = scmp.ne.s32.totalorder %s495, %s496
      %p508 = scmp.eq.s32.totalorder %s33, 7
      %p509 = por %p507, %p508
      %p511 = scmp.ne.s32.totalorder %s496, %s510
      %p512 = scmp.eq.s32.totalorder %s33, 0
      %p513 = por %p511, %p512
      %s515 = sadd.s32 %s514, 1
      %p518 = scmp.eq.s32.totalorder %s27, 7
      %p519 = scmp.ne.s32.totalorder %s514, %s516
      %p520 = scmp.eq.s32.totalorder %s27, 0
      %p521 = por %p519, %p520
      %p522 = scmp.ne.s32.totalorder %s514, %s516
      %p523 = scmp.eq.s32.totalorder %s32, 7
      %p524 = por %p522, %p523
      %p525 = scmp.ne.s32.totalorder %s516, %s517
      %p526 = scmp.eq.s32.totalorder %s32, 0
      %p527 = por %p525, %p526
      %p528 = scmp.ne.s32.totalorder %s516, %s517
      %p529 = scmp.eq.s32.totalorder %s33, 7
      %p530 = por %p528, %p529
      %p532 = scmp.ne.s32.totalorder %s517, %s531
      %p533 = scmp.eq.s32.totalorder %s33, 0
      %p534 = por %p532, %p533
      %s536 = sadd.s32 %s535, 1
      %p539 = scmp.eq.s32.totalorder %s27, 7
      %p540 = scmp.ne.s32.totalorder %s535, %s537
      %p541 = scmp.eq.s32.totalorder %s27, 0
      %p542 = por %p540, %p541
      %p543 = scmp.ne.s32.totalorder %s535, %s537
      %p544 = scmp.eq.s32.totalorder %s32, 7
      %p545 = por %p543, %p544
      %p546 = scmp.ne.s32.totalorder %s537, %s538
      %p547 = scmp.eq.s32.totalorder %s32, 0
      %p548 = por %p546, %p547
      %p549 = scmp.ne.s32.totalorder %s537, %s538
      %p550 = scmp.eq.s32.totalorder %s33, 7
      %p551 = por %p549, %p550
      %p553 = scmp.ne.s32.totalorder %s538, %s552
      %p554 = scmp.eq.s32.totalorder %s33, 0
      %p555 = por %p553, %p554
      %p556 = scmp.le.s32.totalorder 1, %s27
      %p557 = scmp.lt.s32.totalorder %s27, 9
      %p558 = pnand %p556, %p557
      %p559 = pneg %p558
      // Predicated region
      $region9: #{forward.1} parent=5 // pred_check
        _
      $region10: #{forward.1} parent=5 // pred_check_branch
        %561 = sbr.rel (%p558) target = $region12
      $region11: #{forward.1} parent=5 // pred_region
        %s562 = ssub.s32 %s27, 1
        // Predicated region
        $region13: #{forward.1} parent=11 // pred_check
          %p563 = pneg %p48
        $region14: #{forward.1} parent=11 // pred_check_branch
          %565 = sbr.rel (%p563) target = $region16
        $region15: #{forward.1} parent=11 // pred_region
          _
        $region16: #{forward.1} parent=11 // pred_fallthru
          _
        // Predicated region
        $region17: #{forward.1} parent=11 // pred_check
          %p566 = pneg %p69
        $region18: #{forward.1} parent=11 // pred_check_branch
          %568 = sbr.rel (%p566) target = $region20
        $region19: #{forward.1} parent=11 // pred_region
          _
        $region20: #{forward.1} parent=11 // pred_fallthru
          _
        // Predicated region
        $region21: #{forward.1} parent=11 // pred_check
          %p569 = pneg %p506
        $region22: #{forward.1} parent=11 // pred_check_branch
          %571 = sbr.rel (%p569) target = $region24
        $region23: #{forward.1} parent=11 // pred_region
          _
        $region24: #{forward.1} parent=11 // pred_fallthru
          _
        // Predicated region
        $region25: #{forward.1} parent=11 // pred_check
          %p572 = pneg %p527
        $region26: #{forward.1} parent=11 // pred_check_branch
          %574 = sbr.rel (%p572) target = $region28
        $region27: #{forward.1} parent=11 // pred_region
          _
        $region28: #{forward.1} parent=11 // pred_fallthru
          _
      $region12: #{forward.1} parent=5 // pred_fallthru
        _
      %p575 = scmp.lt.s32.totalorder %s27, 8
      // Predicated region
      $region29: #{forward.1} parent=5 // pred_check
        %p576 = pneg %p575
      $region30: #{forward.1} parent=5 // pred_check_branch
        %578 = sbr.rel (%p576) target = $region32
      $region31: #{forward.1} parent=5 // pred_region
        // Predicated region
        $region33: #{forward.1} parent=31 // pred_check
          %p579 = pneg %p89
        $region34: #{forward.1} parent=31 // pred_check_branch
          %581 = sbr.rel (%p579) target = $region36
        $region35: #{forward.1} parent=31 // pred_region
          %p582 = scmp.lt.s32.totalorder %s27, 7
          %s583 = scalar_select %p582, %s27, 7
          %s584 = smul.addr %s583, 8
          %s585 = smul.addr %s584, 8
          %s586 = scalar_lea.vmem %s2, %s585
        $region36: #{forward.1} parent=31 // pred_fallthru
          _
        // Predicated region
        $region37: #{forward.1} parent=31 // pred_check
          %p587 = pneg %p115
        $region38: #{forward.1} parent=31 // pred_check_branch
          %589 = sbr.rel (%p587) target = $region40
        $region39: #{forward.1} parent=31 // pred_region
          %p590 = scmp.lt.s32.totalorder %s27, 7
          %s591 = scalar_select %p590, %s27, 7
          %s592 = scalar_lea.vmem %s3, %s591
        $region40: #{forward.1} parent=31 // pred_fallthru
          _
        // Predicated region
        $region41: #{forward.1} parent=31 // pred_check
          %p593 = pneg %p141
        $region42: #{forward.1} parent=31 // pred_check_branch
          %595 = sbr.rel (%p593) target = $region44
        $region43: #{forward.1} parent=31 // pred_region
          %p596 = scmp.lt.s32.totalorder %s27, 7
          %s597 = scalar_select %p596, %s27, 7
          %s598 = smul.addr %s597, 8
          %s599 = smul.addr %s598, 8
          %s600 = scalar_lea.vmem %s4, %s599
        $region44: #{forward.1} parent=31 // pred_fallthru
          _
        // Predicated region
        $region45: #{forward.1} parent=31 // pred_check
          %p601 = pneg %p167
        $region46: #{forward.1} parent=31 // pred_check_branch
          %603 = sbr.rel (%p601) target = $region48
        $region47: #{forward.1} parent=31 // pred_region
          %p604 = scmp.lt.s32.totalorder %s27, 7
          %s605 = scalar_select %p604, %s27, 7
          %s606 = scalar_lea.vmem %s5, %s605
        $region48: #{forward.1} parent=31 // pred_fallthru
          _
        // Predicated region
        $region49: #{forward.1} parent=31 // pred_check
          %p607 = pneg %p193
        $region50: #{forward.1} parent=31 // pred_check_branch
          %609 = sbr.rel (%p607) target = $region52
        $region51: #{forward.1} parent=31 // pred_region
          %p610 = scmp.lt.s32.totalorder %s27, 7
          %s611 = scalar_select %p610, %s27, 7
          %s612 = smul.addr %s611, 8
          %s613 = smul.addr %s612, 8
          %s614 = scalar_lea.vmem %s6, %s613
        $region52: #{forward.1} parent=31 // pred_fallthru
          _
        // Predicated region
        $region53: #{forward.1} parent=31 // pred_check
          %p615 = pneg %p219
        $region54: #{forward.1} parent=31 // pred_check_branch
          %617 = sbr.rel (%p615) target = $region56
        $region55: #{forward.1} parent=31 // pred_region
          %p618 = scmp.lt.s32.totalorder %s27, 7
          %s619 = scalar_select %p618, %s27, 7
          %s620 = scalar_lea.vmem %s7, %s619
        $region56: #{forward.1} parent=31 // pred_fallthru
          _
        // Predicated region
        $region57: #{forward.1} parent=31 // pred_check
          %p621 = pneg %p245
        $region58: #{forward.1} parent=31 // pred_check_branch
          %623 = sbr.rel (%p621) target = $region60
        $region59: #{forward.1} parent=31 // pred_region
          %p624 = scmp.lt.s32.totalorder %s27, 7
          %s625 = scalar_select %p624, %s27, 7
          %s626 = smul.addr %s625, 8
          %s627 = smul.addr %s626, 8
          %s628 = scalar_lea.vmem %s8, %s627
        $region60: #{forward.1} parent=31 // pred_fallthru
          _
        // Predicated region
        $region61: #{forward.1} parent=31 // pred_check
          %p629 = pneg %p271
        $region62: #{forward.1} parent=31 // pred_check_branch
          %631 = sbr.rel (%p629) target = $region64
        $region63: #{forward.1} parent=31 // pred_region
          %p632 = scmp.lt.s32.totalorder %s27, 7
          %s633 = scalar_select %p632, %s27, 7
          %s634 = scalar_lea.vmem %s9, %s633
        $region64: #{forward.1} parent=31 // pred_fallthru
          _
        // Predicated region
        $region65: #{forward.1} parent=31 // pred_check
          %p635 = pneg %p297
        $region66: #{forward.1} parent=31 // pred_check_branch
          %637 = sbr.rel (%p635) target = $region68
        $region67: #{forward.1} parent=31 // pred_region
          %p638 = scmp.lt.s32.totalorder %s27, 7
          %s639 = scalar_select %p638, %s27, 7
          %s640 = scalar_lea.vmem %s10, %s639
        $region68: #{forward.1} parent=31 // pred_fallthru
          _
        // Predicated region
        $region69: #{forward.1} parent=31 // pred_check
          %p641 = pneg %p323
        $region70: #{forward.1} parent=31 // pred_check_branch
          %643 = sbr.rel (%p641) target = $region72
        $region71: #{forward.1} parent=31 // pred_region
          %p644 = scmp.lt.s32.totalorder %s27, 7
          %s645 = scalar_select %p644, %s27, 7
          %s646 = scalar_lea.vmem %s11, %s645
        $region72: #{forward.1} parent=31 // pred_fallthru
          _
        // Predicated region
        $region73: #{forward.1} parent=31 // pred_check
          %p647 = pneg %p349
        $region74: #{forward.1} parent=31 // pred_check_branch
          %649 = sbr.rel (%p647) target = $region76
        $region75: #{forward.1} parent=31 // pred_region
          %p650 = scmp.lt.s32.totalorder %s27, 7
          %s651 = scalar_select %p650, %s27, 7
          %s652 = smul.addr %s651, 16
          %s653 = smul.addr %s652, 8
          %s654 = scalar_lea.vmem %s12, %s653
        $region76: #{forward.1} parent=31 // pred_fallthru
          _
        // Predicated region
        $region77: #{forward.1} parent=31 // pred_check
          %p655 = pneg %p375
        $region78: #{forward.1} parent=31 // pred_check_branch
          %657 = sbr.rel (%p655) target = $region80
        $region79: #{forward.1} parent=31 // pred_region
          %p658 = scmp.lt.s32.totalorder %s27, 7
          %s659 = scalar_select %p658, %s27, 7
          %s660 = smul.addr %s659, 2
          %s661 = scalar_lea.vmem %s13, %s660
        $region80: #{forward.1} parent=31 // pred_fallthru
          _
        // Predicated region
        $region81: #{forward.1} parent=31 // pred_check
          %p662 = pneg %p401
        $region82: #{forward.1} parent=31 // pred_check_branch
          %664 = sbr.rel (%p662) target = $region84
        $region83: #{forward.1} parent=31 // pred_region
          %p665 = scmp.lt.s32.totalorder %s27, 7
          %s666 = scalar_select %p665, %s27, 7
          %s667 = smul.addr %s666, 32
          %s668 = smul.addr %s667, 8
          %s669 = scalar_lea.vmem %s14, %s668
        $region84: #{forward.1} parent=31 // pred_fallthru
          _
        // Predicated region
        $region85: #{forward.1} parent=31 // pred_check
          %p670 = pneg %p427
        $region86: #{forward.1} parent=31 // pred_check_branch
          %672 = sbr.rel (%p670) target = $region88
        $region87: #{forward.1} parent=31 // pred_region
          %p673 = scmp.lt.s32.totalorder %s27, 7
          %s674 = scalar_select %p673, %s27, 7
          %s675 = scalar_lea.vmem %s15, %s674
        $region88: #{forward.1} parent=31 // pred_fallthru
          _
        // Predicated region
        $region89: #{forward.1} parent=31 // pred_check
          %p676 = pneg %p453
        $region90: #{forward.1} parent=31 // pred_check_branch
          %678 = sbr.rel (%p676) target = $region92
        $region91: #{forward.1} parent=31 // pred_region
          %p679 = scmp.lt.s32.totalorder %s27, 7
          %s680 = scalar_select %p679, %s27, 7
          %s681 = scalar_lea.vmem %s16, %s680
        $region92: #{forward.1} parent=31 // pred_fallthru
          _
        // Predicated region
        $region93: #{forward.1} parent=31 // pred_check
          %p682 = pneg %p479
        $region94: #{forward.1} parent=31 // pred_check_branch
          %684 = sbr.rel (%p682) target = $region96
        $region95: #{forward.1} parent=31 // pred_region
          %p685 = scmp.lt.s32.totalorder %s27, 7
          %s686 = scalar_select %p685, %s27, 7
          %s687 = scalar_lea.vmem %s17, %s686
        $region96: #{forward.1} parent=31 // pred_fallthru
          _
      $region32: #{forward.1} parent=5 // pred_fallthru
        _
      %p688 = scmp.le.s32.totalorder 1, %s27
      %p689 = scmp.lt.s32.totalorder %s27, 9
      %p690 = pnand %p688, %p689
      %p691 = pneg %p690
      // Predicated region
      $region97: #{forward.1} parent=5 // pred_check
        _
      $region98: #{forward.1} parent=5 // pred_check_branch
        %693 = sbr.rel (%p690) target = $region100
      $region99: #{forward.1} parent=5 // pred_region
        %s694 = ssub.s32 %s27, 1
        %p695 = pneg %p48
        %p696 = pneg %p45
        %p697 = pneg %p69
        %p698 = pneg %p66
        %p699 = scmp.lt.s32.totalorder %s32, 7
        %s700 = scalar_select %p699, %s32, 7
        %s701 = smul.addr %s700, 8
        %s702 = smul.addr %s701, 8
        %s703 = scalar_lea.vmem %s2, %s702
        %p704 = pneg %p95
        %p705 = pneg %p92
        %p706 = scmp.lt.s32.totalorder %s32, 7
        %s707 = scalar_select %p706, %s32, 7
        %s708 = scalar_lea.vmem %s3, %s707
        %p709 = pneg %p121
        %p710 = pneg %p118
        %p711 = scmp.lt.s32.totalorder %s32, 7
        %s712 = scalar_select %p711, %s32, 7
        %s713 = smul.addr %s712, 8
        %s714 = smul.addr %s713, 8
        %s715 = scalar_lea.vmem %s4, %s714
        %p716 = pneg %p147
        %p717 = pneg %p144
        %p718 = scmp.lt.s32.totalorder %s32, 7
        %s719 = scalar_select %p718, %s32, 7
        %s720 = scalar_lea.vmem %s5, %s719
        %p721 = pneg %p173
        %p722 = pneg %p170
        %p723 = scmp.lt.s32.totalorder %s32, 7
        %s724 = scalar_select %p723, %s32, 7
        %s725 = smul.addr %s724, 8
        %s726 = smul.addr %s725, 8
        %s727 = scalar_lea.vmem %s6, %s726
        %p728 = pneg %p199
        %p729 = pneg %p196
        %p730 = scmp.lt.s32.totalorder %s32, 7
        %s731 = scalar_select %p730, %s32, 7
        %s732 = scalar_lea.vmem %s7, %s731
        %p733 = pneg %p225
        %p734 = pneg %p222
        %p735 = scmp.lt.s32.totalorder %s32, 7
        %s736 = scalar_select %p735, %s32, 7
        %s737 = smul.addr %s736, 8
        %s738 = smul.addr %s737, 8
        %s739 = scalar_lea.vmem %s8, %s738
        %p740 = pneg %p251
        %p741 = pneg %p248
        %p742 = scmp.lt.s32.totalorder %s32, 7
        %s743 = scalar_select %p742, %s32, 7
        %s744 = scalar_lea.vmem %s9, %s743
        %p745 = pneg %p277
        %p746 = pneg %p274
        %p747 = scmp.lt.s32.totalorder %s32, 7
        %s748 = scalar_select %p747, %s32, 7
        %s749 = scalar_lea.vmem %s10, %s748
        %p750 = pneg %p303
        %p751 = pneg %p300
        %p752 = scmp.lt.s32.totalorder %s32, 7
        %s753 = scalar_select %p752, %s32, 7
        %s754 = scalar_lea.vmem %s11, %s753
        %p755 = pneg %p329
        %p756 = pneg %p326
        %p757 = scmp.lt.s32.totalorder %s32, 7
        %s758 = scalar_select %p757, %s32, 7
        %s759 = smul.addr %s758, 16
        %s760 = smul.addr %s759, 8
        %s761 = scalar_lea.vmem %s12, %s760
        %p762 = pneg %p355
        %p763 = pneg %p352
        %p764 = scmp.lt.s32.totalorder %s32, 7
        %s765 = scalar_select %p764, %s32, 7
        %s766 = smul.addr %s765, 2
        %s767 = scalar_lea.vmem %s13, %s766
        %p768 = pneg %p381
        %p769 = pneg %p378
        %p770 = scmp.lt.s32.totalorder %s32, 7
        %s771 = scalar_select %p770, %s32, 7
        %s772 = smul.addr %s771, 32
        %s773 = smul.addr %s772, 8
        %s774 = scalar_lea.vmem %s14, %s773
        %p775 = pneg %p407
        %p776 = pneg %p404
        %p777 = scmp.lt.s32.totalorder %s32, 7
        %s778 = scalar_select %p777, %s32, 7
        %s779 = scalar_lea.vmem %s15, %s778
        %p780 = pneg %p433
        %p781 = pneg %p430
        %p782 = scmp.lt.s32.totalorder %s32, 7
        %s783 = scalar_select %p782, %s32, 7
        %s784 = scalar_lea.vmem %s16, %s783
        %p785 = pneg %p459
        %p786 = pneg %p456
        %p787 = scmp.lt.s32.totalorder %s32, 7
        %s788 = scalar_select %p787, %s32, 7
        %s789 = scalar_lea.vmem %s17, %s788
        %p790 = pneg %p485
        %p791 = pneg %p482
        %p792 = pneg %p506
        %p793 = pneg %p503
        %p794 = pneg %p527
        %p795 = pneg %p524
        %p796 = pneg %p548
        %p797 = pneg %p545
        %p798 = scmp.lt.s32.totalorder %s32, 7
        %s799 = scalar_select %p798, %s32, 7
        %s800 = smul.addr %s799, 8
        %s801 = smul.addr %s800, 8
        %s802 = scalar_lea.vmem %s2, %s801
        %p803 = scmp.lt.s32.totalorder %s32, 7
        %s804 = scalar_select %p803, %s32, 7
        %s805 = scalar_lea.vmem %s3, %s804
        %p806 = scmp.lt.s32.totalorder %s32, 7
        %s807 = scalar_select %p806, %s32, 7
        %s808 = smul.addr %s807, 8
        %s809 = smul.addr %s808, 8
        %s810 = scalar_lea.vmem %s4, %s809
        %p811 = scmp.lt.s32.totalorder %s32, 7
        %s812 = scalar_select %p811, %s32, 7
        %s813 = scalar_lea.vmem %s5, %s812
        %p814 = scmp.lt.s32.totalorder %s32, 7
        %s815 = scalar_select %p814, %s32, 7
        %s816 = smul.addr %s815, 8
        %s817 = smul.addr %s816, 8
        %s818 = scalar_lea.vmem %s6, %s817
        %p819 = scmp.lt.s32.totalorder %s32, 7
        %s820 = scalar_select %p819, %s32, 7
        %s821 = scalar_lea.vmem %s7, %s820
        %p822 = scmp.lt.s32.totalorder %s32, 7
        %s823 = scalar_select %p822, %s32, 7
        %s824 = smul.addr %s823, 8
        %s825 = smul.addr %s824, 8
        %s826 = scalar_lea.vmem %s8, %s825
        %p827 = scmp.lt.s32.totalorder %s32, 7
        %s828 = scalar_select %p827, %s32, 7
        %s829 = scalar_lea.vmem %s9, %s828
        %p830 = scmp.lt.s32.totalorder %s32, 7
        %s831 = scalar_select %p830, %s32, 7
        %s832 = scalar_lea.vmem %s10, %s831
        %p833 = scmp.lt.s32.totalorder %s32, 7
        %s834 = scalar_select %p833, %s32, 7
        %s835 = scalar_lea.vmem %s11, %s834
        %p836 = scmp.lt.s32.totalorder %s32, 7
        %s837 = scalar_select %p836, %s32, 7
        %s838 = smul.addr %s837, 16
        %s839 = smul.addr %s838, 8
        %s840 = scalar_lea.vmem %s12, %s839
        %p841 = scmp.lt.s32.totalorder %s32, 7
        %s842 = scalar_select %p841, %s32, 7
        %s843 = smul.addr %s842, 2
        %s844 = scalar_lea.vmem %s13, %s843
        %p845 = scmp.lt.s32.totalorder %s32, 7
        %s846 = scalar_select %p845, %s32, 7
        %s847 = smul.addr %s846, 32
        %s848 = smul.addr %s847, 8
        %s849 = scalar_lea.vmem %s14, %s848
        %p850 = scmp.lt.s32.totalorder %s32, 7
        %s851 = scalar_select %p850, %s32, 7
        %s852 = scalar_lea.vmem %s15, %s851
        %p853 = scmp.lt.s32.totalorder %s32, 7
        %s854 = scalar_select %p853, %s32, 7
        %s855 = scalar_lea.vmem %s16, %s854
        %p856 = scmp.lt.s32.totalorder %s32, 7
        %s857 = scalar_select %p856, %s32, 7
        %s858 = scalar_lea.vmem %s17, %s857
        %p859 = scmp.eq.s32.totalorder %s32, 0
        // Predicated region
        $region101: #{forward.1} parent=99 // pred_check
          %p860 = pneg %p859
        $region102: #{forward.1} parent=99 // pred_check_branch
          %862 = sbr.rel (%p860) target = $region104
        $region103: #{forward.1} parent=99 // pred_region
          %v863 = vld [vmem:[%s0] sm:$0xff]
          %v864 = vld [vmem:[%s0 + $0x8] sm:$0xff]
          %vm865 = vcmask 523264
          %866 = vst.msk [vmem:[#allocation2] sm:$0xff] %vm865, %v863
          %867 = vst.msk [vmem:[#allocation2 + $0x8] sm:$0xff] %vm865, %v864
        $region104: #{forward.1} parent=99 // pred_fallthru
          _
        %v868 = vld [vmem:[#allocation2] sm:$0xff]
        %v869 = vld [vmem:[#allocation2 + $0x8] sm:$0xff]
        %v870 = vld [vmem:[%s802] sm:$0xff]
        %v871 = vld [vmem:[%s802 + $0x8] sm:$0xff]
        %v872 = vld [vmem:[%s802 + $0x10] sm:$0xff]
        %v873 = vld [vmem:[%s802 + $0x18] sm:$0xff]
        %v874 = vld [vmem:[%s802 + $0x20] sm:$0xff]
        %v875 = vld [vmem:[%s802 + $0x28] sm:$0xff]
        %v876 = vld [vmem:[%s802 + $0x30] sm:$0xff]
        %v877 = vld [vmem:[%s802 + $0x38] sm:$0xff]
        %v878 = vld [vmem:[%s805] sm:$0x1]
        %v880 = vperm.slane %v878, 0
        %vm882 = vcmask 523264
        %v884 = vsel %vm882, %v868, 0
        %v887 = vsel %vm882, %v869, 0
        %889 = vmatpush.msra.mxu0 0.0
        %890 = vmatpush.msra.mxu0 0.0
        %891 = vmatpush.msra.mxu0 0.0
        %892 = vmatpush.msra.mxu0 0.0
        %893 = vmatpush.msra.mxu0 0.0
        %894 = vmatpush.msra.mxu0 0.0
        %895 = vmatpush.msra.mxu0 0.0
        %896 = vmatpush.msra.mxu0 0.0
        %897 = vmatpush.msra.mxu0 %v877
        %898 = vmatpush.msra.mxu0 %v876
        %899 = vmatpush.msra.mxu0 %v875
        %900 = vmatpush.msra.mxu0 %v874
        %901 = vmatpush.msra.mxu0 %v873
        %902 = vmatpush.msra.mxu0 %v872
        %903 = vmatpush.msra.mxu0 %v871
        %904 = vmatpush.msra.mxu0 %v870
        %905 = vmatmul.f32.gmra.mxu0 %v884
        %v906 = vpop.f32.mrf.mxu0
        %v907 = vadd.f32 %v880, %v906
        %908 = vmatmul.f32.gmra.mxu0 %v887
        %v909 = vpop.f32.mrf.mxu0
        %v910 = vadd.f32 %v880, %v909
        %911 = vdwg.mxu0
        %v912 = vld [vmem:[%s810] sm:$0xff]
        %v913 = vld [vmem:[%s810 + $0x8] sm:$0xff]
        %v914 = vld [vmem:[%s810 + $0x10] sm:$0xff]
        %v915 = vld [vmem:[%s810 + $0x18] sm:$0xff]
        %v916 = vld [vmem:[%s810 + $0x20] sm:$0xff]
        %v917 = vld [vmem:[%s810 + $0x28] sm:$0xff]
        %v918 = vld [vmem:[%s810 + $0x30] sm:$0xff]
        %v919 = vld [vmem:[%s810 + $0x38] sm:$0xff]
        %v920 = vld [vmem:[%s813] sm:$0x1]
        %v922 = vperm.slane %v920, 0
        %924 = vmatpush.msra.mxu0 0.0
        %925 = vmatpush.msra.mxu0 0.0
        %926 = vmatpush.msra.mxu0 0.0
        %927 = vmatpush.msra.mxu0 0.0
        %928 = vmatpush.msra.mxu0 0.0
        %929 = vmatpush.msra.mxu0 0.0
        %930 = vmatpush.msra.mxu0 0.0
        %931 = vmatpush.msra.mxu0 0.0
        %932 = vmatpush.msra.mxu0 %v919
        %933 = vmatpush.msra.mxu0 %v918
        %934 = vmatpush.msra.mxu0 %v917
        %935 = vmatpush.msra.mxu0 %v916
        %936 = vmatpush.msra.mxu0 %v915
        %937 = vmatpush.msra.mxu0 %v914
        %938 = vmatpush.msra.mxu0 %v913
        %939 = vmatpush.msra.mxu0 %v912
        %940 = vmatmul.f32.gmra.mxu0 %v884
        %v941 = vpop.f32.mrf.mxu0
        %v942 = vadd.f32 %v922, %v941
        %943 = vmatmul.f32.gmra.mxu0 %v887
        %v944 = vpop.f32.mrf.mxu0
        %v945 = vadd.f32 %v922, %v944
        %946 = vdwg.mxu0
        %v947 = vld [vmem:[%s818] sm:$0xff]
        %v948 = vld [vmem:[%s818 + $0x8] sm:$0xff]
        %v949 = vld [vmem:[%s818 + $0x10] sm:$0xff]
        %v950 = vld [vmem:[%s818 + $0x18] sm:$0xff]
        %v951 = vld [vmem:[%s818 + $0x20] sm:$0xff]
        %v952 = vld [vmem:[%s818 + $0x28] sm:$0xff]
        %v953 = vld [vmem:[%s818 + $0x30] sm:$0xff]
        %v954 = vld [vmem:[%s818 + $0x38] sm:$0xff]
        %v955 = vld [vmem:[%s821] sm:$0x1]
        %v957 = vperm.slane %v955, 0
        %959 = vmatpush.msra.mxu0 0.0
        %960 = vmatpush.msra.mxu0 0.0
        %961 = vmatpush.msra.mxu0 0.0
        %962 = vmatpush.msra.mxu0 0.0
        %963 = vmatpush.msra.mxu0 0.0
        %964 = vmatpush.msra.mxu0 0.0
        %965 = vmatpush.msra.mxu0 0.0
        %966 = vmatpush.msra.mxu0 0.0
        %967 = vmatpush.msra.mxu0 %v954
        %968 = vmatpush.msra.mxu0 %v953
        %969 = vmatpush.msra.mxu0 %v952
        %970 = vmatpush.msra.mxu0 %v951
        %971 = vmatpush.msra.mxu0 %v950
        %972 = vmatpush.msra.mxu0 %v949
        %973 = vmatpush.msra.mxu0 %v948
        %974 = vmatpush.msra.mxu0 %v947
        %975 = vmatmul.f32.gmra.mxu0 %v884
        %v976 = vpop.f32.mrf.mxu0
        %v977 = vadd.f32 %v957, %v976
        %978 = vmatmul.f32.gmra.mxu0 %v887
        %v979 = vpop.f32.mrf.mxu0
        %v980 = vadd.f32 %v957, %v979
        %981 = vdwg.mxu0
        %v982 = vld [vmem:[%s1] sm:$0xff]
        %v983 = vld [vmem:[%s826] sm:$0xff]
        %v984 = vld [vmem:[%s826 + $0x8] sm:$0xff]
        %v985 = vld [vmem:[%s826 + $0x10] sm:$0xff]
        %v986 = vld [vmem:[%s826 + $0x18] sm:$0xff]
        %v987 = vld [vmem:[%s826 + $0x20] sm:$0xff]
        %v988 = vld [vmem:[%s826 + $0x28] sm:$0xff]
        %v989 = vld [vmem:[%s826 + $0x30] sm:$0xff]
        %v990 = vld [vmem:[%s826 + $0x38] sm:$0xff]
        %vm991 = vcmask 130048
        %v993 = vsel %vm991, %v907, 0
        %v996 = vsel %vm991, %v942, 0
        %998 = vmatpush.xpose.msra.mxu0 0.0
        %999 = vmatpush.xpose.msra.mxu0 0.0
        %1000 = vmatpush.xpose.msra.mxu0 0.0
        %1001 = vmatpush.xpose.msra.mxu0 0.0
        %1002 = vmatpush.xpose.msra.mxu0 0.0
        %1003 = vmatpush.xpose.msra.mxu0 0.0
        %1004 = vmatpush.xpose.msra.mxu0 0.0
        %1005 = vmatpush.xpose.msra.mxu0 0.0
        %1006 = vmatpush.xpose.msra.mxu0 0.0
        %1007 = vmatpush.xpose.msra.mxu0 0.0
        %1008 = vmatpush.xpose.msra.mxu0 0.0
        %1009 = vmatpush.xpose.msra.mxu0 0.0
        %1010 = vmatpush.xpose.msra.mxu0 0.0
        %1011 = vmatpush.xpose.msra.mxu0 0.0
        %1012 = vmatpush.xpose.msra.mxu0 0.0
        %1013 = vmatpush.xpose.msra.mxu0 %v996
        %1014 = vmatmul.f32.gmra.mxu0 %v993
        %v1015 = vpop.f32.mrf.mxu0
        %v1016 = vadd.f32 0.0, %v1015
        %1017 = vdwg.mxu0
        %v1019 = vsel %vm991, %v910, 0
        %v1022 = vsel %vm991, %v945, 0
        %1024 = vmatpush.xpose.msra.mxu0 0.0
        %1025 = vmatpush.xpose.msra.mxu0 0.0
        %1026 = vmatpush.xpose.msra.mxu0 0.0
        %1027 = vmatpush.xpose.msra.mxu0 0.0
        %1028 = vmatpush.xpose.msra.mxu0 0.0
        %1029 = vmatpush.xpose.msra.mxu0 0.0
        %1030 = vmatpush.xpose.msra.mxu0 0.0
        %1031 = vmatpush.xpose.msra.mxu0 0.0
        %1032 = vmatpush.xpose.msra.mxu0 0.0
        %1033 = vmatpush.xpose.msra.mxu0 0.0
        %1034 = vmatpush.xpose.msra.mxu0 0.0
        %1035 = vmatpush.xpose.msra.mxu0 0.0
        %1036 = vmatpush.xpose.msra.mxu0 0.0
        %1037 = vmatpush.xpose.msra.mxu0 0.0
        %1038 = vmatpush.xpose.msra.mxu0 0.0
        %1039 = vmatpush.xpose.msra.mxu0 %v1022
        %1040 = vmatmul.f32.gmra.mxu0 %v1019
        %v1041 = vpop.f32.mrf.mxu0
        %v1042 = vadd.f32 0.0, %v1041
        %1043 = vdwg.mxu0
        %v1044 = vmul.f32 %v1016, 0.25
        %v1045 = vmul.f32 %v1042, 0.25
        %v1046 = vadd.f32 %v1044, %v982
        %v1047 = vadd.f32 %v1045, %v982
        %vm1048 = vcmask 64512
        %v1049 = vsel %vm1048, %v1046, -inf
        %1050 = vmax.xlane.f32.xlu0 %v1049
        %v1051 = vpop.xlane.xlu0 %1050
        %v1052 = vsel %vm1048, %v1047, -inf
        %1053 = vmax.xlane.f32.xlu0 %v1052
        %v1054 = vpop.xlane.xlu0 %1053
        %v1055 = vsub.f32 %v1046, %v1051
        %v1056 = vsub.f32 %v1047, %v1054
        %v1057 = vmul.f32 %v1055, 1.442695
        %v1058 = vpow.pop %v1057
        %v1059 = vmul.f32 %v1056, 1.442695
        %v1060 = vpow.pop %v1059
        %v1061 = vsel %vm1048, %v1058, 0.0
        %1062 = vadd.xlane.f32.xlu0 %v1061
        %v1063 = vpop.xlane.xlu0 %1062
        %v1064 = vsel %vm1048, %v1060, 0.0
        %1065 = vadd.xlane.f32.xlu0 %v1064
        %v1066 = vpop.xlane.xlu0 %1065
        %v1067 = vrcp.pop %v1063
        %v1068 = vmul.f32 %v1063, %v1067
        %v1069 = vsub.f32 1.0, %v1068
        %v1070 = vmul.f32 %v1067, %v1069
        %v1071 = vadd.f32 %v1067, %v1070
        %vm1072 = vweird.f32 %v1063
        %vm1073 = vweird.f32 %v1067
        %vm1074 = vmor %vm1072, %vm1073
        %v1075 = vsel %vm1074, %v1067, %v1071
        %v1076 = vand.u32 2147483647, %v1063
        %vm1077 = vcmp.eq.f32.partialorder %v1076, 8.507059e+37
        %v1078 = vand.u32 %v1063, 2147483648
        %v1079 = vor.u32 1.1754944e-38, %v1078
        %v1080 = vsel %vm1077, %v1079, %v1075
        %v1081 = vmul.f32 %v1058, %v1080
        %v1082 = vrcp.pop %v1066
        %v1083 = vmul.f32 %v1066, %v1082
        %v1084 = vsub.f32 1.0, %v1083
        %v1085 = vmul.f32 %v1082, %v1084
        %v1086 = vadd.f32 %v1082, %v1085
        %vm1087 = vweird.f32 %v1066
        %vm1088 = vweird.f32 %v1082
        %vm1089 = vmor %vm1087, %vm1088
        %v1090 = vsel %vm1089, %v1082, %v1086
        %v1091 = vand.u32 2147483647, %v1066
        %vm1092 = vcmp.eq.f32.partialorder %v1091, 8.507059e+37
        %v1093 = vand.u32 %v1066, 2147483648
        %v1094 = vor.u32 1.1754944e-38, %v1093
        %v1095 = vsel %vm1092, %v1094, %v1090
        %v1096 = vmul.f32 %v1060, %v1095
        %v1098 = vsel %vm1048, %v1081, 0
        %1100 = vmatpush.msra.mxu0 0.0
        %1101 = vmatpush.msra.mxu0 0.0
        %1102 = vmatpush.msra.mxu0 0.0
        %1103 = vmatpush.msra.mxu0 0.0
        %1104 = vmatpush.msra.mxu0 0.0
        %1105 = vmatpush.msra.mxu0 0.0
        %1106 = vmatpush.msra.mxu0 0.0
        %1107 = vmatpush.msra.mxu0 0.0
        %1108 = vmatpush.msra.mxu0 0.0
        %1109 = vmatpush.msra.mxu0 0.0
        %1110 = vmatpush.msra.mxu0 0.0
        %1111 = vmatpush.msra.mxu0 0.0
        %1112 = vmatpush.msra.mxu0 0.0
        %1113 = vmatpush.msra.mxu0 0.0
        %1114 = vmatpush.msra.mxu0 0.0
        %1115 = vmatpush.msra.mxu0 %v977
        %1116 = vmatmul.f32.gmra.mxu0 %v1098
        %v1117 = vpop.f32.mrf.mxu0
        %v1118 = vadd.f32 0.0, %v1117
        %1119 = vdwg.mxu0
        %v1121 = vsel %vm1048, %v1096, 0
        %1123 = vmatpush.msra.mxu0 0.0
        %1124 = vmatpush.msra.mxu0 0.0
        %1125 = vmatpush.msra.mxu0 0.0
        %1126 = vmatpush.msra.mxu0 0.0
        %1127 = vmatpush.msra.mxu0 0.0
        %1128 = vmatpush.msra.mxu0 0.0
        %1129 = vmatpush.msra.mxu0 0.0
        %1130 = vmatpush.msra.mxu0 0.0
        %1131 = vmatpush.msra.mxu0 0.0
        %1132 = vmatpush.msra.mxu0 0.0
        %1133 = vmatpush.msra.mxu0 0.0
        %1134 = vmatpush.msra.mxu0 0.0
        %1135 = vmatpush.msra.mxu0 0.0
        %1136 = vmatpush.msra.mxu0 0.0
        %1137 = vmatpush.msra.mxu0 0.0
        %1138 = vmatpush.msra.mxu0 %v980
        %1139 = vmatmul.f32.gmra.mxu0 %v1121
        %v1140 = vpop.f32.mrf.mxu0
        %v1141 = vadd.f32 0.0, %v1140
        %1142 = vdwg.mxu0
        %1143 = vrot.lane.b32.xlu0 %v907, 112
        %v1144 = vpop.permute.xlu0 %1143
        %1145 = vrot.lane.b32.xlu0 %v942, 112
        %v1146 = vpop.permute.xlu0 %1145
        %v1147 = vsel %vm991, %v1144, 0
        %v1149 = vsel %vm991, %v1146, 0
        %1151 = vmatpush.xpose.msra.mxu0 0.0
        %1152 = vmatpush.xpose.msra.mxu0 0.0
        %1153 = vmatpush.xpose.msra.mxu0 0.0
        %1154 = vmatpush.xpose.msra.mxu0 0.0
        %1155 = vmatpush.xpose.msra.mxu0 0.0
        %1156 = vmatpush.xpose.msra.mxu0 0.0
        %1157 = vmatpush.xpose.msra.mxu0 0.0
        %1158 = vmatpush.xpose.msra.mxu0 0.0
        %1159 = vmatpush.xpose.msra.mxu0 0.0
        %1160 = vmatpush.xpose.msra.mxu0 0.0
        %1161 = vmatpush.xpose.msra.mxu0 0.0
        %1162 = vmatpush.xpose.msra.mxu0 0.0
        %1163 = vmatpush.xpose.msra.mxu0 0.0
        %1164 = vmatpush.xpose.msra.mxu0 0.0
        %1165 = vmatpush.xpose.msra.mxu0 0.0
        %1166 = vmatpush.xpose.msra.mxu0 %v1149
        %1167 = vmatmul.f32.gmra.mxu0 %v1147
        %v1168 = vpop.f32.mrf.mxu0
        %v1169 = vadd.f32 0.0, %v1168
        %1170 = vdwg.mxu0
        %1171 = vrot.lane.b32.xlu0 %v910, 112
        %v1172 = vpop.permute.xlu0 %1171
        %1173 = vrot.lane.b32.xlu0 %v945, 112
        %v1174 = vpop.permute.xlu0 %1173
        %v1175 = vsel %vm991, %v1172, 0
        %v1177 = vsel %vm991, %v1174, 0
        %1179 = vmatpush.xpose.msra.mxu0 0.0
        %1180 = vmatpush.xpose.msra.mxu0 0.0
        %1181 = vmatpush.xpose.msra.mxu0 0.0
        %1182 = vmatpush.xpose.msra.mxu0 0.0
        %1183 = vmatpush.xpose.msra.mxu0 0.0
        %1184 = vmatpush.xpose.msra.mxu0 0.0
        %1185 = vmatpush.xpose.msra.mxu0 0.0
        %1186 = vmatpush.xpose.msra.mxu0 0.0
        %1187 = vmatpush.xpose.msra.mxu0 0.0
        %1188 = vmatpush.xpose.msra.mxu0 0.0
        %1189 = vmatpush.xpose.msra.mxu0 0.0
        %1190 = vmatpush.xpose.msra.mxu0 0.0
        %1191 = vmatpush.xpose.msra.mxu0 0.0
        %1192 = vmatpush.xpose.msra.mxu0 0.0
        %1193 = vmatpush.xpose.msra.mxu0 0.0
        %1194 = vmatpush.xpose.msra.mxu0 %v1177
        %1195 = vmatmul.f32.gmra.mxu0 %v1175
        %v1196 = vpop.f32.mrf.mxu0
        %v1197 = vadd.f32 0.0, %v1196
        %1198 = vdwg.mxu0
        %v1199 = vmul.f32 %v1169, 0.25
        %v1200 = vmul.f32 %v1197, 0.25
        %v1201 = vadd.f32 %v1199, %v982
        %v1202 = vadd.f32 %v1200, %v982
        %v1203 = vsel %vm1048, %v1201, -inf
        %1204 = vmax.xlane.f32.xlu0 %v1203
        %v1205 = vpop.xlane.xlu0 %1204
        %v1206 = vsel %vm1048, %v1202, -inf
        %1207 = vmax.xlane.f32.xlu0 %v1206
        %v1208 = vpop.xlane.xlu0 %1207
        %v1209 = vsub.f32 %v1201, %v1205
        %v1210 = vsub.f32 %v1202, %v1208
        %v1211 = vmul.f32 %v1209, 1.442695
        %v1212 = vpow.pop %v1211
        %v1213 = vmul.f32 %v1210, 1.442695
        %v1214 = vpow.pop %v1213
        %v1215 = vsel %vm1048, %v1212, 0.0
        %1216 = vadd.xlane.f32.xlu0 %v1215
        %v1217 = vpop.xlane.xlu0 %1216
        %v1218 = vsel %vm1048, %v1214, 0.0
        %1219 = vadd.xlane.f32.xlu0 %v1218
        %v1220 = vpop.xlane.xlu0 %1219
        %v1221 = vrcp.pop %v1217
        %v1222 = vmul.f32 %v1217, %v1221
        %v1223 = vsub.f32 1.0, %v1222
        %v1224 = vmul.f32 %v1221, %v1223
        %v1225 = vadd.f32 %v1221, %v1224
        %vm1226 = vweird.f32 %v1217
        %vm1227 = vweird.f32 %v1221
        %vm1228 = vmor %vm1226, %vm1227
        %v1229 = vsel %vm1228, %v1221, %v1225
        %v1230 = vand.u32 2147483647, %v1217
        %vm1231 = vcmp.eq.f32.partialorder %v1230, 8.507059e+37
        %v1232 = vand.u32 %v1217, 2147483648
        %v1233 = vor.u32 1.1754944e-38, %v1232
        %v1234 = vsel %vm1231, %v1233, %v1229
        %v1235 = vmul.f32 %v1212, %v1234
        %v1236 = vrcp.pop %v1220
        %v1237 = vmul.f32 %v1220, %v1236
        %v1238 = vsub.f32 1.0, %v1237
        %v1239 = vmul.f32 %v1236, %v1238
        %v1240 = vadd.f32 %v1236, %v1239
        %vm1241 = vweird.f32 %v1220
        %vm1242 = vweird.f32 %v1236
        %vm1243 = vmor %vm1241, %vm1242
        %v1244 = vsel %vm1243, %v1236, %v1240
        %v1245 = vand.u32 2147483647, %v1220
        %vm1246 = vcmp.eq.f32.partialorder %v1245, 8.507059e+37
        %v1247 = vand.u32 %v1220, 2147483648
        %v1248 = vor.u32 1.1754944e-38, %v1247
        %v1249 = vsel %vm1246, %v1248, %v1244
        %v1250 = vmul.f32 %v1214, %v1249
        %1252 = vrot.lane.b32.xlu0 %v977, 112
        %v1253 = vpop.permute.xlu0 %1252
        %v1256 = vsel %vm1048, %v1235, 0
        %1258 = vmatpush.msra.mxu0 0.0
        %1259 = vmatpush.msra.mxu0 0.0
        %1260 = vmatpush.msra.mxu0 0.0
        %1261 = vmatpush.msra.mxu0 0.0
        %1262 = vmatpush.msra.mxu0 0.0
        %1263 = vmatpush.msra.mxu0 0.0
        %1264 = vmatpush.msra.mxu0 0.0
        %1265 = vmatpush.msra.mxu0 0.0
        %1266 = vmatpush.msra.mxu0 0.0
        %1267 = vmatpush.msra.mxu0 0.0
        %1268 = vmatpush.msra.mxu0 0.0
        %1269 = vmatpush.msra.mxu0 0.0
        %1270 = vmatpush.msra.mxu0 0.0
        %1271 = vmatpush.msra.mxu0 0.0
        %1272 = vmatpush.msra.mxu0 0.0
        %1273 = vmatpush.msra.mxu0 %v1253
        %1274 = vmatmul.f32.gmra.mxu0 %v1256
        %v1275 = vpop.f32.mrf.mxu0
        %v1276 = vadd.f32 0.0, %v1275
        %1277 = vdwg.mxu0
        %1279 = vrot.lane.b32.xlu0 %v980, 112
        %v1280 = vpop.permute.xlu0 %1279
        %v1283 = vsel %vm1048, %v1250, 0
        %1285 = vmatpush.msra.mxu0 0.0
        %1286 = vmatpush.msra.mxu0 0.0
        %1287 = vmatpush.msra.mxu0 0.0
        %1288 = vmatpush.msra.mxu0 0.0
        %1289 = vmatpush.msra.mxu0 0.0
        %1290 = vmatpush.msra.mxu0 0.0
        %1291 = vmatpush.msra.mxu0 0.0
        %1292 = vmatpush.msra.mxu0 0.0
        %1293 = vmatpush.msra.mxu0 0.0
        %1294 = vmatpush.msra.mxu0 0.0
        %1295 = vmatpush.msra.mxu0 0.0
        %1296 = vmatpush.msra.mxu0 0.0
        %1297 = vmatpush.msra.mxu0 0.0
        %1298 = vmatpush.msra.mxu0 0.0
        %1299 = vmatpush.msra.mxu0 0.0
        %1300 = vmatpush.msra.mxu0 %v1280
        %1301 = vmatmul.f32.gmra.mxu0 %v1283
        %v1302 = vpop.f32.mrf.mxu0
        %v1303 = vadd.f32 0.0, %v1302
        %1304 = vdwg.mxu0
        %v1306 = vsel %vm991, %v1276, 0
        %v1309 = vsel %vm991, %v1303, 0
        %1311 = vmatpush.msra.mxu0 0.0
        %1312 = vmatpush.msra.mxu0 0.0
        %1313 = vmatpush.msra.mxu0 0.0
        %1314 = vmatpush.msra.mxu0 0.0
        %1315 = vmatpush.msra.mxu0 0.0
        %1316 = vmatpush.msra.mxu0 0.0
        %1317 = vmatpush.msra.mxu0 0.0
        %1318 = vmatpush.msra.mxu0 0.0
        %1319 = vmatpush.msra.mxu0 0.0
        %1320 = vmatpush.msra.mxu0 0.0
        %1321 = vmatpush.msra.mxu0 0.0
        %1322 = vmatpush.msra.mxu0 0.0
        %1323 = vmatpush.msra.mxu0 0.0
        %1324 = vmatpush.msra.mxu0 0.0
        %1325 = vmatpush.msra.mxu0 %v986
        %1326 = vmatpush.msra.mxu0 %v985
        %1327 = vmatmul.f32.gmra.mxu0 %v1306
        %v1328 = vpop.f32.mrf.mxu0
        %v1329 = vadd.f32 0.0, %v1328
        %1330 = vmatmul.f32.gmra.mxu0 %v1309
        %v1331 = vpop.f32.mrf.mxu0
        %v1332 = vadd.f32 0.0, %v1331
        %1333 = vdwg.mxu0
        %v1335 = vsel %vm991, %v1118, 0
        %v1338 = vsel %vm991, %v1141, 0
        %1340 = vmatpush.msra.mxu0 0.0
        %1341 = vmatpush.msra.mxu0 0.0
        %1342 = vmatpush.msra.mxu0 0.0
        %1343 = vmatpush.msra.mxu0 0.0
        %1344 = vmatpush.msra.mxu0 0.0
        %1345 = vmatpush.msra.mxu0 0.0
        %1346 = vmatpush.msra.mxu0 0.0
        %1347 = vmatpush.msra.mxu0 0.0
        %1348 = vmatpush.msra.mxu0 0.0
        %1349 = vmatpush.msra.mxu0 0.0
        %1350 = vmatpush.msra.mxu0 0.0
        %1351 = vmatpush.msra.mxu0 0.0
        %1352 = vmatpush.msra.mxu0 0.0
        %1353 = vmatpush.msra.mxu0 0.0
        %1354 = vmatpush.msra.mxu0 %v984
        %1355 = vmatpush.msra.mxu0 %v983
        %1356 = vmatmul.f32.gmra.mxu0 %v1335
        %v1357 = vpop.f32.mrf.mxu0
        %v1358 = vadd.f32 %v1329, %v1357
        %1359 = vmatmul.f32.gmra.mxu0 %v1338
        %v1360 = vpop.f32.mrf.mxu0
        %v1361 = vadd.f32 %v1332, %v1360
        %1362 = vdwg.mxu0
        %1363 = vrot.lane.b32.xlu0 %v907, 96
        %v1364 = vpop.permute.xlu0 %1363
        %1365 = vrot.lane.b32.xlu0 %v942, 96
        %v1366 = vpop.permute.xlu0 %1365
        %v1367 = vsel %vm991, %v1364, 0
        %v1369 = vsel %vm991, %v1366, 0
        %1371 = vmatpush.xpose.msra.mxu0 0.0
        %1372 = vmatpush.xpose.msra.mxu0 0.0
        %1373 = vmatpush.xpose.msra.mxu0 0.0
        %1374 = vmatpush.xpose.msra.mxu0 0.0
        %1375 = vmatpush.xpose.msra.mxu0 0.0
        %1376 = vmatpush.xpose.msra.mxu0 0.0
        %1377 = vmatpush.xpose.msra.mxu0 0.0
        %1378 = vmatpush.xpose.msra.mxu0 0.0
        %1379 = vmatpush.xpose.msra.mxu0 0.0
        %1380 = vmatpush.xpose.msra.mxu0 0.0
        %1381 = vmatpush.xpose.msra.mxu0 0.0
        %1382 = vmatpush.xpose.msra.mxu0 0.0
        %1383 = vmatpush.xpose.msra.mxu0 0.0
        %1384 = vmatpush.xpose.msra.mxu0 0.0
        %1385 = vmatpush.xpose.msra.mxu0 0.0
        %1386 = vmatpush.xpose.msra.mxu0 %v1369
        %1387 = vmatmul.f32.gmra.mxu0 %v1367
        %v1388 = vpop.f32.mrf.mxu0
        %v1389 = vadd.f32 0.0, %v1388
        %1390 = vdwg.mxu0
        %1391 = vrot.lane.b32.xlu0 %v910, 96
        %v1392 = vpop.permute.xlu0 %1391
        %1393 = vrot.lane.b32.xlu0 %v945, 96
        %v1394 = vpop.permute.xlu0 %1393
        %v1395 = vsel %vm991, %v1392, 0
        %v1397 = vsel %vm991, %v1394, 0
        %1399 = vmatpush.xpose.msra.mxu0 0.0
        %1400 = vmatpush.xpose.msra.mxu0 0.0
        %1401 = vmatpush.xpose.msra.mxu0 0.0
        %1402 = vmatpush.xpose.msra.mxu0 0.0
        %1403 = vmatpush.xpose.msra.mxu0 0.0
        %1404 = vmatpush.xpose.msra.mxu0 0.0
        %1405 = vmatpush.xpose.msra.mxu0 0.0
        %1406 = vmatpush.xpose.msra.mxu0 0.0
        %1407 = vmatpush.xpose.msra.mxu0 0.0
        %1408 = vmatpush.xpose.msra.mxu0 0.0
        %1409 = vmatpush.xpose.msra.mxu0 0.0
        %1410 = vmatpush.xpose.msra.mxu0 0.0
        %1411 = vmatpush.xpose.msra.mxu0 0.0
        %1412 = vmatpush.xpose.msra.mxu0 0.0
        %1413 = vmatpush.xpose.msra.mxu0 0.0
        %1414 = vmatpush.xpose.msra.mxu0 %v1397
        %1415 = vmatmul.f32.gmra.mxu0 %v1395
        %v1416 = vpop.f32.mrf.mxu0
        %v1417 = vadd.f32 0.0, %v1416
        %1418 = vdwg.mxu0
        %v1419 = vmul.f32 %v1389, 0.25
        %v1420 = vmul.f32 %v1417, 0.25
        %v1421 = vadd.f32 %v1419, %v982
        %v1422 = vadd.f32 %v1420, %v982
        %v1423 = vsel %vm1048, %v1421, -inf
        %1424 = vmax.xlane.f32.xlu0 %v1423
        %v1425 = vpop.xlane.xlu0 %1424
        %v1426 = vsel %vm1048, %v1422, -inf
        %1427 = vmax.xlane.f32.xlu0 %v1426
        %v1428 = vpop.xlane.xlu0 %1427
        %v1429 = vsub.f32 %v1421, %v1425
        %v1430 = vsub.f32 %v1422, %v1428
        %v1431 = vmul.f32 %v1429, 1.442695
        %v1432 = vpow.pop %v1431
        %v1433 = vmul.f32 %v1430, 1.442695
        %v1434 = vpow.pop %v1433
        %v1435 = vsel %vm1048, %v1432, 0.0
        %1436 = vadd.xlane.f32.xlu0 %v1435
        %v1437 = vpop.xlane.xlu0 %1436
        %v1438 = vsel %vm1048, %v1434, 0.0
        %1439 = vadd.xlane.f32.xlu0 %v1438
        %v1440 = vpop.xlane.xlu0 %1439
        %v1441 = vrcp.pop %v1437
        %v1442 = vmul.f32 %v1437, %v1441
        %v1443 = vsub.f32 1.0, %v1442
        %v1444 = vmul.f32 %v1441, %v1443
        %v1445 = vadd.f32 %v1441, %v1444
        %vm1446 = vweird.f32 %v1437
        %vm1447 = vweird.f32 %v1441
        %vm1448 = vmor %vm1446, %vm1447
        %v1449 = vsel %vm1448, %v1441, %v1445
        %v1450 = vand.u32 2147483647, %v1437
        %vm1451 = vcmp.eq.f32.partialorder %v1450, 8.507059e+37
        %v1452 = vand.u32 %v1437, 2147483648
        %v1453 = vor.u32 1.1754944e-38, %v1452
        %v1454 = vsel %vm1451, %v1453, %v1449
        %v1455 = vmul.f32 %v1432, %v1454
        %v1456 = vrcp.pop %v1440
        %v1457 = vmul.f32 %v1440, %v1456
        %v1458 = vsub.f32 1.0, %v1457
        %v1459 = vmul.f32 %v1456, %v1458
        %v1460 = vadd.f32 %v1456, %v1459
        %vm1461 = vweird.f32 %v1440
        %vm1462 = vweird.f32 %v1456
        %vm1463 = vmor %vm1461, %vm1462
        %v1464 = vsel %vm1463, %v1456, %v1460
        %v1465 = vand.u32 2147483647, %v1440
        %vm1466 = vcmp.eq.f32.partialorder %v1465, 8.507059e+37
        %v1467 = vand.u32 %v1440, 2147483648
        %v1468 = vor.u32 1.1754944e-38, %v1467
        %v1469 = vsel %vm1466, %v1468, %v1464
        %v1470 = vmul.f32 %v1434, %v1469
        %1471 = vrot.lane.b32.xlu0 %v977, 96
        %v1472 = vpop.permute.xlu0 %1471
        %v1475 = vsel %vm1048, %v1455, 0
        %1477 = vmatpush.msra.mxu0 0.0
        %1478 = vmatpush.msra.mxu0 0.0
        %1479 = vmatpush.msra.mxu0 0.0
        %1480 = vmatpush.msra.mxu0 0.0
        %1481 = vmatpush.msra.mxu0 0.0
        %1482 = vmatpush.msra.mxu0 0.0
        %1483 = vmatpush.msra.mxu0 0.0
        %1484 = vmatpush.msra.mxu0 0.0
        %1485 = vmatpush.msra.mxu0 0.0
        %1486 = vmatpush.msra.mxu0 0.0
        %1487 = vmatpush.msra.mxu0 0.0
        %1488 = vmatpush.msra.mxu0 0.0
        %1489 = vmatpush.msra.mxu0 0.0
        %1490 = vmatpush.msra.mxu0 0.0
        %1491 = vmatpush.msra.mxu0 0.0
        %1492 = vmatpush.msra.mxu0 %v1472
        %1493 = vmatmul.f32.gmra.mxu0 %v1475
        %v1494 = vpop.f32.mrf.mxu0
        %v1495 = vadd.f32 0.0, %v1494
        %1496 = vdwg.mxu0
        %1497 = vrot.lane.b32.xlu0 %v980, 96
        %v1498 = vpop.permute.xlu0 %1497
        %v1501 = vsel %vm1048, %v1470, 0
        %1503 = vmatpush.msra.mxu0 0.0
        %1504 = vmatpush.msra.mxu0 0.0
        %1505 = vmatpush.msra.mxu0 0.0
        %1506 = vmatpush.msra.mxu0 0.0
        %1507 = vmatpush.msra.mxu0 0.0
        %1508 = vmatpush.msra.mxu0 0.0
        %1509 = vmatpush.msra.mxu0 0.0
        %1510 = vmatpush.msra.mxu0 0.0
        %1511 = vmatpush.msra.mxu0 0.0
        %1512 = vmatpush.msra.mxu0 0.0
        %1513 = vmatpush.msra.mxu0 0.0
        %1514 = vmatpush.msra.mxu0 0.0
        %1515 = vmatpush.msra.mxu0 0.0
        %1516 = vmatpush.msra.mxu0 0.0
        %1517 = vmatpush.msra.mxu0 0.0
        %1518 = vmatpush.msra.mxu0 %v1498
        %1519 = vmatmul.f32.gmra.mxu0 %v1501
        %v1520 = vpop.f32.mrf.mxu0
        %v1521 = vadd.f32 0.0, %v1520
        %1522 = vdwg.mxu0
        %v1524 = vsel %vm991, %v1495, 0
        %v1527 = vsel %vm991, %v1521, 0
        %1529 = vmatpush.msra.mxu0 0.0
        %1530 = vmatpush.msra.mxu0 0.0
        %1531 = vmatpush.msra.mxu0 0.0
        %1532 = vmatpush.msra.mxu0 0.0
        %1533 = vmatpush.msra.mxu0 0.0
        %1534 = vmatpush.msra.mxu0 0.0
        %1535 = vmatpush.msra.mxu0 0.0
        %1536 = vmatpush.msra.mxu0 0.0
        %1537 = vmatpush.msra.mxu0 0.0
        %1538 = vmatpush.msra.mxu0 0.0
        %1539 = vmatpush.msra.mxu0 0.0
        %1540 = vmatpush.msra.mxu0 0.0
        %1541 = vmatpush.msra.mxu0 0.0
        %1542 = vmatpush.msra.mxu0 0.0
        %1543 = vmatpush.msra.mxu0 %v988
        %1544 = vmatpush.msra.mxu0 %v987
        %1545 = vmatmul.f32.gmra.mxu0 %v1524
        %v1546 = vpop.f32.mrf.mxu0
        %v1547 = vadd.f32 0.0, %v1546
        %1548 = vmatmul.f32.gmra.mxu0 %v1527
        %v1549 = vpop.f32.mrf.mxu0
        %v1550 = vadd.f32 0.0, %v1549
        %1551 = vdwg.mxu0
        %v1552 = vadd.f32 %v1358, %v1547
        %v1553 = vadd.f32 %v1361, %v1550
        %1554 = vrot.lane.b32.xlu0 %v907, 80
        %v1555 = vpop.permute.xlu0 %1554
        %1556 = vrot.lane.b32.xlu0 %v942, 80
        %v1557 = vpop.permute.xlu0 %1556
        %v1558 = vsel %vm991, %v1555, 0
        %v1560 = vsel %vm991, %v1557, 0
        %1562 = vmatpush.xpose.msra.mxu0 0.0
        %1563 = vmatpush.xpose.msra.mxu0 0.0
        %1564 = vmatpush.xpose.msra.mxu0 0.0
        %1565 = vmatpush.xpose.msra.mxu0 0.0
        %1566 = vmatpush.xpose.msra.mxu0 0.0
        %1567 = vmatpush.xpose.msra.mxu0 0.0
        %1568 = vmatpush.xpose.msra.mxu0 0.0
        %1569 = vmatpush.xpose.msra.mxu0 0.0
        %1570 = vmatpush.xpose.msra.mxu0 0.0
        %1571 = vmatpush.xpose.msra.mxu0 0.0
        %1572 = vmatpush.xpose.msra.mxu0 0.0
        %1573 = vmatpush.xpose.msra.mxu0 0.0
        %1574 = vmatpush.xpose.msra.mxu0 0.0
        %1575 = vmatpush.xpose.msra.mxu0 0.0
        %1576 = vmatpush.xpose.msra.mxu0 0.0
        %1577 = vmatpush.xpose.msra.mxu0 %v1560
        %1578 = vmatmul.f32.gmra.mxu0 %v1558
        %v1579 = vpop.f32.mrf.mxu0
        %v1580 = vadd.f32 0.0, %v1579
        %1581 = vdwg.mxu0
        %1582 = vrot.lane.b32.xlu0 %v910, 80
        %v1583 = vpop.permute.xlu0 %1582
        %1584 = vrot.lane.b32.xlu0 %v945, 80
        %v1585 = vpop.permute.xlu0 %1584
        %v1586 = vsel %vm991, %v1583, 0
        %v1588 = vsel %vm991, %v1585, 0
        %1590 = vmatpush.xpose.msra.mxu0 0.0
        %1591 = vmatpush.xpose.msra.mxu0 0.0
        %1592 = vmatpush.xpose.msra.mxu0 0.0
        %1593 = vmatpush.xpose.msra.mxu0 0.0
        %1594 = vmatpush.xpose.msra.mxu0 0.0
        %1595 = vmatpush.xpose.msra.mxu0 0.0
        %1596 = vmatpush.xpose.msra.mxu0 0.0
        %1597 = vmatpush.xpose.msra.mxu0 0.0
        %1598 = vmatpush.xpose.msra.mxu0 0.0
        %1599 = vmatpush.xpose.msra.mxu0 0.0
        %1600 = vmatpush.xpose.msra.mxu0 0.0
        %1601 = vmatpush.xpose.msra.mxu0 0.0
        %1602 = vmatpush.xpose.msra.mxu0 0.0
        %1603 = vmatpush.xpose.msra.mxu0 0.0
        %1604 = vmatpush.xpose.msra.mxu0 0.0
        %1605 = vmatpush.xpose.msra.mxu0 %v1588
        %1606 = vmatmul.f32.gmra.mxu0 %v1586
        %v1607 = vpop.f32.mrf.mxu0
        %v1608 = vadd.f32 0.0, %v1607
        %1609 = vdwg.mxu0
        %v1610 = vmul.f32 %v1580, 0.25
        %v1611 = vmul.f32 %v1608, 0.25
        %v1612 = vadd.f32 %v1610, %v982
        %v1613 = vadd.f32 %v1611, %v982
        %v1614 = vsel %vm1048, %v1612, -inf
        %1615 = vmax.xlane.f32.xlu0 %v1614
        %v1616 = vpop.xlane.xlu0 %1615
        %v1617 = vsel %vm1048, %v1613, -inf
        %1618 = vmax.xlane.f32.xlu0 %v1617
        %v1619 = vpop.xlane.xlu0 %1618
        %v1620 = vsub.f32 %v1612, %v1616
        %v1621 = vsub.f32 %v1613, %v1619
        %v1622 = vmul.f32 %v1620, 1.442695
        %v1623 = vpow.pop %v1622
        %v1624 = vmul.f32 %v1621, 1.442695
        %v1625 = vpow.pop %v1624
        %v1626 = vsel %vm1048, %v1623, 0.0
        %1627 = vadd.xlane.f32.xlu0 %v1626
        %v1628 = vpop.xlane.xlu0 %1627
        %v1629 = vsel %vm1048, %v1625, 0.0
        %1630 = vadd.xlane.f32.xlu0 %v1629
        %v1631 = vpop.xlane.xlu0 %1630
        %v1632 = vrcp.pop %v1628
        %v1633 = vmul.f32 %v1628, %v1632
        %v1634 = vsub.f32 1.0, %v1633
        %v1635 = vmul.f32 %v1632, %v1634
        %v1636 = vadd.f32 %v1632, %v1635
        %vm1637 = vweird.f32 %v1628
        %vm1638 = vweird.f32 %v1632
        %vm1639 = vmor %vm1637, %vm1638
        %v1640 = vsel %vm1639, %v1632, %v1636
        %v1641 = vand.u32 2147483647, %v1628
        %vm1642 = vcmp.eq.f32.partialorder %v1641, 8.507059e+37
        %v1643 = vand.u32 %v1628, 2147483648
        %v1644 = vor.u32 1.1754944e-38, %v1643
        %v1645 = vsel %vm1642, %v1644, %v1640
        %v1646 = vmul.f32 %v1623, %v1645
        %v1647 = vrcp.pop %v1631
        %v1648 = vmul.f32 %v1631, %v1647
        %v1649 = vsub.f32 1.0, %v1648
        %v1650 = vmul.f32 %v1647, %v1649
        %v1651 = vadd.f32 %v1647, %v1650
        %vm1652 = vweird.f32 %v1631
        %vm1653 = vweird.f32 %v1647
        %vm1654 = vmor %vm1652, %vm1653
        %v1655 = vsel %vm1654, %v1647, %v1651
        %v1656 = vand.u32 2147483647, %v1631
        %vm1657 = vcmp.eq.f32.partialorder %v1656, 8.507059e+37
        %v1658 = vand.u32 %v1631, 2147483648
        %v1659 = vor.u32 1.1754944e-38, %v1658
        %v1660 = vsel %vm1657, %v1659, %v1655
        %v1661 = vmul.f32 %v1625, %v1660
        %1662 = vrot.lane.b32.xlu0 %v977, 80
        %v1663 = vpop.permute.xlu0 %1662
        %v1666 = vsel %vm1048, %v1646, 0
        %1668 = vmatpush.msra.mxu0 0.0
        %1669 = vmatpush.msra.mxu0 0.0
        %1670 = vmatpush.msra.mxu0 0.0
        %1671 = vmatpush.msra.mxu0 0.0
        %1672 = vmatpush.msra.mxu0 0.0
        %1673 = vmatpush.msra.mxu0 0.0
        %1674 = vmatpush.msra.mxu0 0.0
        %1675 = vmatpush.msra.mxu0 0.0
        %1676 = vmatpush.msra.mxu0 0.0
        %1677 = vmatpush.msra.mxu0 0.0
        %1678 = vmatpush.msra.mxu0 0.0
        %1679 = vmatpush.msra.mxu0 0.0
        %1680 = vmatpush.msra.mxu0 0.0
        %1681 = vmatpush.msra.mxu0 0.0
        %1682 = vmatpush.msra.mxu0 0.0
        %1683 = vmatpush.msra.mxu0 %v1663
        %1684 = vmatmul.f32.gmra.mxu0 %v1666
        %v1685 = vpop.f32.mrf.mxu0
        %v1686 = vadd.f32 0.0, %v1685
        %1687 = vdwg.mxu0
        %1688 = vrot.lane.b32.xlu0 %v980, 80
        %v1689 = vpop.permute.xlu0 %1688
        %v1692 = vsel %vm1048, %v1661, 0
        %1694 = vmatpush.msra.mxu0 0.0
        %1695 = vmatpush.msra.mxu0 0.0
        %1696 = vmatpush.msra.mxu0 0.0
        %1697 = vmatpush.msra.mxu0 0.0
        %1698 = vmatpush.msra.mxu0 0.0
        %1699 = vmatpush.msra.mxu0 0.0
        %1700 = vmatpush.msra.mxu0 0.0
        %1701 = vmatpush.msra.mxu0 0.0
        %1702 = vmatpush.msra.mxu0 0.0
        %1703 = vmatpush.msra.mxu0 0.0
        %1704 = vmatpush.msra.mxu0 0.0
        %1705 = vmatpush.msra.mxu0 0.0
        %1706 = vmatpush.msra.mxu0 0.0
        %1707 = vmatpush.msra.mxu0 0.0
        %1708 = vmatpush.msra.mxu0 0.0
        %1709 = vmatpush.msra.mxu0 %v1689
        %1710 = vmatmul.f32.gmra.mxu0 %v1692
        %v1711 = vpop.f32.mrf.mxu0
        %v1712 = vadd.f32 0.0, %v1711
        %1713 = vdwg.mxu0
        %v1715 = vsel %vm991, %v1686, 0
        %v1718 = vsel %vm991, %v1712, 0
        %1720 = vmatpush.msra.mxu0 0.0
        %1721 = vmatpush.msra.mxu0 0.0
        %1722 = vmatpush.msra.mxu0 0.0
        %1723 = vmatpush.msra.mxu0 0.0
        %1724 = vmatpush.msra.mxu0 0.0
        %1725 = vmatpush.msra.mxu0 0.0
        %1726 = vmatpush.msra.mxu0 0.0
        %1727 = vmatpush.msra.mxu0 0.0
        %1728 = vmatpush.msra.mxu0 0.0
        %1729 = vmatpush.msra.mxu0 0.0
        %1730 = vmatpush.msra.mxu0 0.0
        %1731 = vmatpush.msra.mxu0 0.0
        %1732 = vmatpush.msra.mxu0 0.0
        %1733 = vmatpush.msra.mxu0 0.0
        %1734 = vmatpush.msra.mxu0 %v990
        %1735 = vmatpush.msra.mxu0 %v989
        %1736 = vmatmul.f32.gmra.mxu0 %v1715
        %v1737 = vpop.f32.mrf.mxu0
        %v1738 = vadd.f32 0.0, %v1737
        %1739 = vmatmul.f32.gmra.mxu0 %v1718
        %v1740 = vpop.f32.mrf.mxu0
        %v1741 = vadd.f32 0.0, %v1740
        %1742 = vdwg.mxu0
        %v1743 = vadd.f32 %v1552, %v1738
        %v1744 = vadd.f32 %v1553, %v1741
        %v1745 = vld [vmem:[%s829] sm:$0x1]
        %v1747 = vperm.slane %v1745, 0
        %v1749 = vadd.f32 %v1743, %v1747
        %v1750 = vadd.f32 %v1744, %v1747
        %v1751 = vadd.f32 %v1749, %v868
        %v1752 = vadd.f32 %v1750, %v869
        %v1753 = vld [vmem:[%s832] sm:$0x1]
        %v1754 = vld [vmem:[%s835] sm:$0x1]
        %v1755 = vsel %vm882, %v1751, 0.0
        %1756 = vadd.xlane.f32.xlu0 %v1755
        %v1757 = vpop.xlane.xlu0 %1756
        %v1758 = vsel %vm882, %v1752, 0.0
        %1759 = vadd.xlane.f32.xlu0 %v1758
        %v1760 = vpop.xlane.xlu0 %1759
        %v1761 = vrcp.pop 64.0
        %v1762 = vmul.f32 64.0, %v1761
        %v1763 = vsub.f32 1.0, %v1762
        %v1764 = vmul.f32 %v1761, %v1763
        %v1765 = vadd.f32 %v1761, %v1764
        %vm1766 = vweird.f32 %v1761
        %v1767 = vsel %vm1766, %v1761, %v1765
        %v1768 = vmul.f32 %v1757, %v1767
        %v1769 = vmul.f32 %v1760, %v1767
        %v1770 = vsub.f32 %v1751, %v1768
        %v1771 = vsub.f32 %v1752, %v1769
        %v1772 = vmul.f32 %v1770, %v1770
        %v1773 = vmul.f32 %v1771, %v1771
        %v1774 = vsel %vm882, %v1772, 0.0
        %1775 = vadd.xlane.f32.xlu0 %v1774
        %v1776 = vpop.xlane.xlu0 %1775
        %v1777 = vsel %vm882, %v1773, 0.0
        %1778 = vadd.xlane.f32.xlu0 %v1777
        %v1779 = vpop.xlane.xlu0 %1778
        %v1780 = vmul.f32 %v1776, %v1767
        %v1781 = vmul.f32 %v1779, %v1767
        %v1782 = vadd.f32 %v1780, 1e-05
        %v1783 = vadd.f32 %v1781, 1e-05
        %v1784 = vrsqrt.pop %v1782
        %v1785 = vmul.f32 %v1784, %v1782
        %v1786 = vmul.f32 %v1785, %v1784
        %v1787 = vmul.f32 0.5, %v1786
        %v1788 = vsub.f32 1.5, %v1787
        %v1789 = vmul.f32 %v1784, %v1788
        %vm1790 = vweird.f32 %v1782
        %vm1791 = vweird.f32 %v1784
        %vm1792 = vmor %vm1790, %vm1791
        %v1793 = vsel %vm1792, %v1784, %v1789
        %v1794 = vrsqrt.pop %v1783
        %v1795 = vmul.f32 %v1794, %v1783
        %v1796 = vmul.f32 %v1795, %v1794
        %v1797 = vmul.f32 0.5, %v1796
        %v1798 = vsub.f32 1.5, %v1797
        %v1799 = vmul.f32 %v1794, %v1798
        %vm1800 = vweird.f32 %v1783
        %vm1801 = vweird.f32 %v1794
        %vm1802 = vmor %vm1800, %vm1801
        %v1803 = vsel %vm1802, %v1794, %v1799
        %v1804 = vmul.f32 %v1770, %v1793
        %v1805 = vmul.f32 %v1771, %v1803
        %v1807 = vperm.slane %v1753, 0
        %v1809 = vmul.f32 %v1804, %v1807
        %v1810 = vmul.f32 %v1805, %v1807
        %v1812 = vperm.slane %v1754, 0
        %v1814 = vadd.f32 %v1809, %v1812
        %v1815 = vadd.f32 %v1810, %v1812
        %v1816 = vld [vmem:[%s840] sm:$0xff]
        %v1817 = vld [vmem:[%s840 + $0x8] sm:$0xff]
        %v1818 = vld [vmem:[%s840 + $0x10] sm:$0xff]
        %v1819 = vld [vmem:[%s840 + $0x18] sm:$0xff]
        %v1820 = vld [vmem:[%s840 + $0x20] sm:$0xff]
        %v1821 = vld [vmem:[%s840 + $0x28] sm:$0xff]
        %v1822 = vld [vmem:[%s840 + $0x30] sm:$0xff]
        %v1823 = vld [vmem:[%s840 + $0x38] sm:$0xff]
        %v1824 = vld [vmem:[%s840 + $0x40] sm:$0xff]
        %v1825 = vld [vmem:[%s840 + $0x48] sm:$0xff]
        %v1826 = vld [vmem:[%s840 + $0x50] sm:$0xff]
        %v1827 = vld [vmem:[%s840 + $0x58] sm:$0xff]
        %v1828 = vld [vmem:[%s840 + $0x60] sm:$0xff]
        %v1829 = vld [vmem:[%s840 + $0x68] sm:$0xff]
        %v1830 = vld [vmem:[%s840 + $0x70] sm:$0xff]
        %v1831 = vld [vmem:[%s840 + $0x78] sm:$0xff]
        %v1832 = vld [vmem:[%s844] sm:$0x3]
        %v1834 = vperm.slane %v1832, 0
        %v1835 = vperm.slane %v1832, 1
        %v1839 = vsel %vm882, %v1814, 0
        %v1842 = vsel %vm882, %v1815, 0
        %1844 = vmatpush.msra.mxu0 0.0
        %1845 = vmatpush.msra.mxu0 0.0
        %1846 = vmatpush.msra.mxu0 0.0
        %1847 = vmatpush.msra.mxu0 0.0
        %1848 = vmatpush.msra.mxu0 0.0
        %1849 = vmatpush.msra.mxu0 0.0
        %1850 = vmatpush.msra.mxu0 0.0
        %1851 = vmatpush.msra.mxu0 0.0
        %1852 = vmatpush.msra.mxu0 %v1830
        %1853 = vmatpush.msra.mxu0 %v1828
        %1854 = vmatpush.msra.mxu0 %v1826
        %1855 = vmatpush.msra.mxu0 %v1824
        %1856 = vmatpush.msra.mxu0 %v1822
        %1857 = vmatpush.msra.mxu0 %v1820
        %1858 = vmatpush.msra.mxu0 %v1818
        %1859 = vmatpush.msra.mxu0 %v1816
        %1860 = vmatmul.f32.gmra.mxu0 %v1839
        %v1861 = vpop.f32.mrf.mxu0
        %v1862 = vadd.f32 %v1834, %v1861
        %1863 = vmatmul.f32.gmra.mxu0 %v1842
        %v1864 = vpop.f32.mrf.mxu0
        %v1865 = vadd.f32 %v1834, %v1864
        %1866 = vdwg.mxu0
        %1867 = vmatpush.msra.mxu0 0.0
        %1868 = vmatpush.msra.mxu0 0.0
        %1869 = vmatpush.msra.mxu0 0.0
        %1870 = vmatpush.msra.mxu0 0.0
        %1871 = vmatpush.msra.mxu0 0.0
        %1872 = vmatpush.msra.mxu0 0.0
        %1873 = vmatpush.msra.mxu0 0.0
        %1874 = vmatpush.msra.mxu0 0.0
        %1875 = vmatpush.msra.mxu0 %v1831
        %1876 = vmatpush.msra.mxu0 %v1829
        %1877 = vmatpush.msra.mxu0 %v1827
        %1878 = vmatpush.msra.mxu0 %v1825
        %1879 = vmatpush.msra.mxu0 %v1823
        %1880 = vmatpush.msra.mxu0 %v1821
        %1881 = vmatpush.msra.mxu0 %v1819
        %1882 = vmatpush.msra.mxu0 %v1817
        %1883 = vmatmul.f32.gmra.mxu0 %v1839
        %v1884 = vpop.f32.mrf.mxu0
        %v1885 = vadd.f32 %v1835, %v1884
        %1886 = vmatmul.f32.gmra.mxu0 %v1842
        %v1887 = vpop.f32.mrf.mxu0
        %v1888 = vadd.f32 %v1835, %v1887
        %1889 = vdwg.mxu0
        %v1890 = vmax.f32 %v1862, 0.0
        %v1891 = vmax.f32 %v1885, 0.0
        %v1892 = vmax.f32 %v1865, 0.0
        %v1893 = vmax.f32 %v1888, 0.0
        %v1894 = vld [vmem:[%s849] sm:$0xff]
        %v1895 = vld [vmem:[%s849 + $0x8] sm:$0xff]
        %v1896 = vld [vmem:[%s849 + $0x10] sm:$0xff]
        %v1897 = vld [vmem:[%s849 + $0x18] sm:$0xff]
        %v1898 = vld [vmem:[%s849 + $0x20] sm:$0xff]
        %v1899 = vld [vmem:[%s849 + $0x28] sm:$0xff]
        %v1900 = vld [vmem:[%s849 + $0x30] sm:$0xff]
        %v1901 = vld [vmem:[%s849 + $0x38] sm:$0xff]
        %v1902 = vld [vmem:[%s849 + $0x40] sm:$0xff]
        %v1903 = vld [vmem:[%s849 + $0x48] sm:$0xff]
        %v1904 = vld [vmem:[%s849 + $0x50] sm:$0xff]
        %v1905 = vld [vmem:[%s849 + $0x58] sm:$0xff]
        %v1906 = vld [vmem:[%s849 + $0x60] sm:$0xff]
        %v1907 = vld [vmem:[%s849 + $0x68] sm:$0xff]
        %v1908 = vld [vmem:[%s849 + $0x70] sm:$0xff]
        %v1909 = vld [vmem:[%s849 + $0x78] sm:$0xff]
        %v1910 = vld [vmem:[%s849 + $0x80] sm:$0xff]
        %v1911 = vld [vmem:[%s849 + $0x88] sm:$0xff]
        %v1912 = vld [vmem:[%s849 + $0x90] sm:$0xff]
        %v1913 = vld [vmem:[%s849 + $0x98] sm:$0xff]
        %v1914 = vld [vmem:[%s849 + $0xa0] sm:$0xff]
        %v1915 = vld [vmem:[%s849 + $0xa8] sm:$0xff]
        %v1916 = vld [vmem:[%s849 + $0xb0] sm:$0xff]
        %v1917 = vld [vmem:[%s849 + $0xb8] sm:$0xff]
        %v1918 = vld [vmem:[%s849 + $0xc0] sm:$0xff]
        %v1919 = vld [vmem:[%s849 + $0xc8] sm:$0xff]
        %v1920 = vld [vmem:[%s849 + $0xd0] sm:$0xff]
        %v1921 = vld [vmem:[%s849 + $0xd8] sm:$0xff]
        %v1922 = vld [vmem:[%s849 + $0xe0] sm:$0xff]
        %v1923 = vld [vmem:[%s849 + $0xe8] sm:$0xff]
        %v1924 = vld [vmem:[%s849 + $0xf0] sm:$0xff]
        %v1925 = vld [vmem:[%s849 + $0xf8] sm:$0xff]
        %v1926 = vld [vmem:[%s852] sm:$0x1]
        %v1928 = vperm.slane %v1926, 0
        %1930 = vmatpush.msra.mxu0 %v1909
        %1931 = vmatpush.msra.mxu0 %v1908
        %1932 = vmatpush.msra.mxu0 %v1907
        %1933 = vmatpush.msra.mxu0 %v1906
        %1934 = vmatpush.msra.mxu0 %v1905
        %1935 = vmatpush.msra.mxu0 %v1904
        %1936 = vmatpush.msra.mxu0 %v1903
        %1937 = vmatpush.msra.mxu0 %v1902
        %1938 = vmatpush.msra.mxu0 %v1901
        %1939 = vmatpush.msra.mxu0 %v1900
        %1940 = vmatpush.msra.mxu0 %v1899
        %1941 = vmatpush.msra.mxu0 %v1898
        %1942 = vmatpush.msra.mxu0 %v1897
        %1943 = vmatpush.msra.mxu0 %v1896
        %1944 = vmatpush.msra.mxu0 %v1895
        %1945 = vmatpush.msra.mxu0 %v1894
        %1946 = vmatmul.f32.gmra.mxu0 %v1890
        %v1947 = vpop.f32.mrf.mxu0
        %v1948 = vadd.f32 %v1928, %v1947
        %1949 = vmatmul.f32.gmra.mxu0 %v1892
        %v1950 = vpop.f32.mrf.mxu0
        %v1951 = vadd.f32 %v1928, %v1950
        %1952 = vdwg.mxu0
        %1953 = vmatpush.msra.mxu0 %v1925
        %1954 = vmatpush.msra.mxu0 %v1924
        %1955 = vmatpush.msra.mxu0 %v1923
        %1956 = vmatpush.msra.mxu0 %v1922
        %1957 = vmatpush.msra.mxu0 %v1921
        %1958 = vmatpush.msra.mxu0 %v1920
        %1959 = vmatpush.msra.mxu0 %v1919
        %1960 = vmatpush.msra.mxu0 %v1918
        %1961 = vmatpush.msra.mxu0 %v1917
        %1962 = vmatpush.msra.mxu0 %v1916
        %1963 = vmatpush.msra.mxu0 %v1915
        %1964 = vmatpush.msra.mxu0 %v1914
        %1965 = vmatpush.msra.mxu0 %v1913
        %1966 = vmatpush.msra.mxu0 %v1912
        %1967 = vmatpush.msra.mxu0 %v1911
        %1968 = vmatpush.msra.mxu0 %v1910
        %1969 = vmatmul.f32.gmra.mxu0 %v1891
        %v1970 = vpop.f32.mrf.mxu0
        %v1971 = vadd.f32 %v1948, %v1970
        %1972 = vmatmul.f32.gmra.mxu0 %v1893
        %v1973 = vpop.f32.mrf.mxu0
        %v1974 = vadd.f32 %v1951, %v1973
        %1975 = vdwg.mxu0
        %v1976 = vadd.f32 %v1971, %v1814
        %v1977 = vadd.f32 %v1974, %v1815
        %v1978 = vld [vmem:[%s855] sm:$0x1]
        %v1979 = vld [vmem:[%s858] sm:$0x1]
        %v1980 = vsel %vm882, %v1976, 0.0
        %1981 = vadd.xlane.f32.xlu0 %v1980
        %v1982 = vpop.xlane.xlu0 %1981
        %v1983 = vsel %vm882, %v1977, 0.0
        %1984 = vadd.xlane.f32.xlu0 %v1983
        %v1985 = vpop.xlane.xlu0 %1984
        %v1986 = vmul.f32 %v1982, %v1767
        %v1987 = vmul.f32 %v1985, %v1767
        %v1988 = vsub.f32 %v1976, %v1986
        %v1989 = vsub.f32 %v1977, %v1987
        %v1990 = vmul.f32 %v1988, %v1988
        %v1991 = vmul.f32 %v1989, %v1989
        %v1992 = vsel %vm882, %v1990, 0.0
        %1993 = vadd.xlane.f32.xlu0 %v1992
        %v1994 = vpop.xlane.xlu0 %1993
        %v1995 = vsel %vm882, %v1991, 0.0
        %1996 = vadd.xlane.f32.xlu0 %v1995
        %v1997 = vpop.xlane.xlu0 %1996
        %v1998 = vmul.f32 %v1994, %v1767
        %v1999 = vmul.f32 %v1997, %v1767
        %v2000 = vadd.f32 %v1998, 1e-05
        %v2001 = vadd.f32 %v1999, 1e-05
        %v2002 = vrsqrt.pop %v2000
        %v2003 = vmul.f32 %v2002, %v2000
        %v2004 = vmul.f32 %v2003, %v2002
        %v2005 = vmul.f32 0.5, %v2004
        %v2006 = vsub.f32 1.5, %v2005
        %v2007 = vmul.f32 %v2002, %v2006
        %vm2008 = vweird.f32 %v2000
        %vm2009 = vweird.f32 %v2002
        %vm2010 = vmor %vm2008, %vm2009
        %v2011 = vsel %vm2010, %v2002, %v2007
        %v2012 = vrsqrt.pop %v2001
        %v2013 = vmul.f32 %v2012, %v2001
        %v2014 = vmul.f32 %v2013, %v2012
        %v2015 = vmul.f32 0.5, %v2014
        %v2016 = vsub.f32 1.5, %v2015
        %v2017 = vmul.f32 %v2012, %v2016
        %vm2018 = vweird.f32 %v2001
        %vm2019 = vweird.f32 %v2012
        %vm2020 = vmor %vm2018, %vm2019
        %v2021 = vsel %vm2020, %v2012, %v2017
        %v2022 = vmul.f32 %v1988, %v2011
        %v2023 = vmul.f32 %v1989, %v2021
        %v2025 = vperm.slane %v1978, 0
        %v2027 = vmul.f32 %v2022, %v2025
        %v2028 = vmul.f32 %v2023, %v2025
        %v2030 = vperm.slane %v1979, 0
        %v2032 = vadd.f32 %v2027, %v2030
        %v2033 = vadd.f32 %v2028, %v2030
        %2034 = vst.msk [vmem:[#allocation2] sm:$0xff] %vm882, %v2032
        %2035 = vst.msk [vmem:[#allocation2 + $0x8] sm:$0xff] %vm882, %v2033
        %p2036 = scmp.eq.s32.totalorder %s32, 7
        // Predicated region
        $region105: #{forward.1} parent=99 // pred_check
          %p2037 = pneg %p2036
        $region106: #{forward.1} parent=99 // pred_check_branch
          %2039 = sbr.rel (%p2037) target = $region108
        $region107: #{forward.1} parent=99 // pred_region
          %v2040 = vld [vmem:[%s18] sm:$0xff]
          %v2041 = vld [vmem:[%s18 + $0x8] sm:$0xff]
          %v2042 = vld [vmem:[%s18 + $0x10] sm:$0xff]
          %v2043 = vld [vmem:[%s18 + $0x18] sm:$0xff]
          %v2044 = vld [vmem:[%s18 + $0x20] sm:$0xff]
          %v2045 = vld [vmem:[%s18 + $0x28] sm:$0xff]
          %v2046 = vld [vmem:[%s18 + $0x30] sm:$0xff]
          %v2047 = vld [vmem:[%s18 + $0x38] sm:$0xff]
          %v2048 = vld [vmem:[%s19] sm:$0x1]
          %v2050 = vperm.slane %v2048, 0
          %v2053 = vsel %vm882, %v2032, 0
          %v2056 = vsel %vm882, %v2033, 0
          %2058 = vmatpush.msra.mxu0 0.0
          %2059 = vmatpush.msra.mxu0 0.0
          %2060 = vmatpush.msra.mxu0 0.0
          %2061 = vmatpush.msra.mxu0 0.0
          %2062 = vmatpush.msra.mxu0 0.0
          %2063 = vmatpush.msra.mxu0 0.0
          %2064 = vmatpush.msra.mxu0 0.0
          %2065 = vmatpush.msra.mxu0 0.0
          %2066 = vmatpush.msra.mxu0 %v2047
          %2067 = vmatpush.msra.mxu0 %v2046
          %2068 = vmatpush.msra.mxu0 %v2045
          %2069 = vmatpush.msra.mxu0 %v2044
          %2070 = vmatpush.msra.mxu0 %v2043
          %2071 = vmatpush.msra.mxu0 %v2042
          %2072 = vmatpush.msra.mxu0 %v2041
          %2073 = vmatpush.msra.mxu0 %v2040
          %2074 = vmatmul.f32.gmra.mxu0 %v2053
          %v2075 = vpop.f32.mrf.mxu0
          %v2076 = vadd.f32 %v2050, %v2075
          %2077 = vmatmul.f32.gmra.mxu0 %v2056
          %v2078 = vpop.f32.mrf.mxu0
          %v2079 = vadd.f32 %v2050, %v2078
          %2080 = vdwg.mxu0
          %2081 = vst [vmem:[#allocation3] sm:$0xff] %v2076
          %2082 = vst [vmem:[#allocation3 + $0x8] sm:$0xff] %v2079
        $region108: #{forward.1} parent=99 // pred_fallthru
          _
        // Predicated region
        $region109: #{forward.1} parent=99 // pred_check
          %p2083 = pneg %p545
        $region110: #{forward.1} parent=99 // pred_check_branch
          %2085 = sbr.rel (%p2083) target = $region112
        $region111: #{forward.1} parent=99 // pred_region
          %2087 = vsyncadd [#allocation4], 0
          %s2088 = sshll.u32 [#allocation3], 4
          %s2089 = int_to_ptr.vmem [resolvable:$true] %s2088
          %s2090 = sshll.u32 %s20, 4
          %s2091 = int_to_ptr.hbm [resolvable:$true] %s2090
          %2096 = dma.vmem_to_hbm [thread:$0]  %s2089, 256, %s2091, [#allocation4], 128, 128, 8
        $region112: #{forward.1} parent=99 // pred_fallthru
          _
        // Predicated region
        $region113: #{forward.1} parent=99 // pred_check
          %p2097 = pneg %p545
        $region114: #{forward.1} parent=99 // pred_check_branch
          %2099 = sbr.rel (%p2097) target = $region116
        $region115: #{forward.1} parent=99 // pred_region
          %2101 = dma.done [#allocation4], 256
        $region116: #{forward.1} parent=99 // pred_fallthru
          _
      $region100: #{forward.1} parent=5 // pred_fallthru
        _
      %p2102 = scmp.le.s32.totalorder 2, %s27
      // Predicated region
      $region117: #{forward.1} parent=5 // pred_check
        %p2103 = pneg %p2102
      $region118: #{forward.1} parent=5 // pred_check_branch
        %2105 = sbr.rel (%p2103) target = $region120
      $region119: #{forward.1} parent=5 // pred_region
        %s2106 = ssub.s32 %s27, 2
      $region120: #{forward.1} parent=5 // pred_fallthru
        _
    $region6: #{forward.1} parent=1 // loop_footer
      %s31 = sadd.s32 1, %s27
    $region7: #{forward.1} parent=1 // loop_footer_branch
      %26 = sbr.rel target = $region3
    $region8: #{forward.1} parent=1 // loop_exit
      _
    %2107 = vsyncpa [#allocation4], 1
    %s2108 = scalar_lea.sflag [#allocation4], 1
    %2109 = vsyncpa %s2108, 1

</llo_original>
